<compile_context>
chip_gen: v7x
topology: tpu7x:2x2x1
jax: 0.10.0
libtpu: 0.0.40
codegen_flags: <defaults>
</compile_context>

<pallas_src>
import math
import jax
import jax.numpy as jnp
from jax import lax
from jax.experimental import pallas as pl
from jax.experimental.pallas import tpu as pltpu

# ---- synthetic model hyper-parameters (shapes implied by the forward) -------
C_IN = 4        # event channels (polarity/time bins)
C_HID = 32      # siamese feature channels
K_OBJ = 16      # objdet channels (e.g. classes + box regressors)
K_FAC = 8       # facet channels
MAX_DISP = 8    # number of candidate disparities for soft-argmin


def _round_up(x, m):
    return ((x + m - 1) // m) * m


# fused head layout (rows of the packed weight block); offsets padded to
# multiples of 8 so in-kernel sublane slices are aligned.
NL = K_OBJ + K_FAC + 1          # left heads:  objdet | facets | concentrate
NR = K_FAC + 1                  # right heads: facets_right | concentrate
NL_PAD = _round_up(NL, 8)       # 32
NR_PAD = _round_up(NR, 8)       # 16
P_COLS = C_HID + 1              # weight columns + one bias column
ROW_L = C_HID                   # packed-block row offsets
ROW_R = C_HID + NL_PAD
P_ROWS = C_HID + NL_PAD + NR_PAD


def _init_params():
    key = jax.random.PRNGKey(0)
    ks = jax.random.split(key, 6)

    def lin(k, cin, cout):
        w = jax.random.normal(k, (cin, cout), jnp.float32) * (1.0 / math.sqrt(cin))
        b = jnp.zeros((1, cout), jnp.float32)
        return w, b

    wf, bf = lin(ks[0], C_IN, C_HID)
    wc, bc = lin(ks[1], C_HID, 1)
    wo, bo = lin(ks[2], C_HID, K_OBJ)
    wfa, bfa = lin(ks[3], C_HID, K_FAC)
    wfr, bfr = lin(ks[4], C_HID, K_FAC)
    return (wf, bf, wc, bc, wo, bo, wfa, bfa, wfr, bfr)


def _pack_params(params):
    """Pack all weights/biases into one (P_ROWS, P_COLS) f32 block."""
    wf, bf, wc, bc, wo, bo, wfa, bfa, wfr, bfr = params
    p = jnp.zeros((P_ROWS, P_COLS), jnp.float32)
    # feature extractor, transposed so the kernel does  wf_t @ x  directly
    p = p.at[0:C_HID, 0:C_IN].set(wf.T)
    p = p.at[0:C_HID, C_HID].set(bf.reshape(-1))
    # fused left heads: [objdet | facets | concentrate]
    w_l = jnp.concatenate([wo.T, wfa.T, wc.T], axis=0)            # (NL, C_HID)
    b_l = jnp.concatenate([bo.reshape(-1), bfa.reshape(-1), bc.reshape(-1)])
    p = p.at[ROW_L:ROW_L + NL, 0:C_HID].set(w_l)
    p = p.at[ROW_L:ROW_L + NL, C_HID].set(b_l)
    # fused right heads: [facets_right | concentrate]
    w_r = jnp.concatenate([wfr.T, wc.T], axis=0)                  # (NR, C_HID)
    b_r = jnp.concatenate([bfr.reshape(-1), bc.reshape(-1)])
    p = p.at[ROW_R:ROW_R + NR, 0:C_HID].set(w_r)
    p = p.at[ROW_R:ROW_R + NR, C_HID].set(b_r)
    return p


def _choose_row_tile(H, W, budget_bytes=12 * 1024 * 1024):
    """Largest row-tile TH such that H % TH == 0, TH*W is a multiple of 128
    (or TH == H), and the estimated per-tile VMEM working set fits the budget.
    Budget is sized so the tile also fits v7x's smaller (64 MiB) VMEM."""
    out_ch = K_OBJ + 2 * K_FAC + 3
    # f32 bytes/pixel: double-buffered events + features + fused head outputs
    # + band cost volume & softmax temps + double-buffered outputs.
    per_px = 4 * (2 * C_IN * 2 + 2 * C_HID + NL_PAD + NR_PAD
                  + 4 * MAX_DISP + 2 * out_ch)
    valid = [th for th in range(1, H + 1)
             if H % th == 0 and ((th * W) % 128 == 0 or th == H)]
    fits = [th for th in valid if th * W * per_px <= budget_bytes]
    th = max(fits) if fits else min(valid)
    # expose >= 2 row tiles when possible so the (batch, row) grid always has
    # several parallel shards (v7x has 2 TensorCores per chip).
    if H // th == 1:
        smaller = [t for t in fits if t <= H // 2] or \
                  [t for t in valid if t <= H // 2]
        if smaller:
            th = max(smaller)
    return th


def onnx_style_network_forward(left_event, right_event, h_cam, w_cam, params):
    """left_event/right_event: NCHW (B, C_IN, H, W). h_cam/w_cam: scalars used
    by the original module only for img-meta bookkeeping (`.item()`)."""
    del h_cam, w_cam  # metadata only; no compute
    B, Cin, H, W = left_event.shape
    assert Cin == C_IN
    M = H * W

    # NCHW -> (B, C, H*W): a free reshape (no transpose), channel-major layout
    # keeps the pixel axis on the 128-lane dimension throughout the kernel.
    le = left_event.reshape(B, C_IN, M).astype(jnp.float32)
    re = right_event.reshape(B, C_IN, M).astype(jnp.float32)
    p = _pack_params(params)

    TH = _choose_row_tile(H, W)
    n_row_tiles = H // TH
    TM = TH * W
    inv_sqrt_c = 1.0 / math.sqrt(C_HID)

    def kernel(le_ref, re_ref, p_ref,
               obj_ref, fac_ref, facr_ref, cl_ref, cr_ref, disp_ref):
        le_t = le_ref[0]                          # (C_IN, TM), pixels on lanes
        re_t = re_ref[0]
        pb = p_ref[...]                           # (P_ROWS, P_COLS)

        wf_t = pb[0:C_HID, 0:C_IN]                # (C_HID, C_IN)
        bf = pb[0:C_HID, C_HID:C_HID + 1]         # (C_HID, 1)
        whl = pb[ROW_L:ROW_L + NL_PAD, 0:C_HID]   # (NL_PAD, C_HID)
        bhl = pb[ROW_L:ROW_L + NL_PAD, C_HID:C_HID + 1]
        whr = pb[ROW_R:ROW_R + NR_PAD, 0:C_HID]   # (NR_PAD, C_HID)
        bhr = pb[ROW_R:ROW_R + NR_PAD, C_HID:C_HID + 1]

        # ---- siamese 1x1-conv feature extraction (MXU) + ReLU --------------
        fl = jnp.maximum(
            jnp.dot(wf_t, le_t, preferred_element_type=jnp.float32) + bf, 0.0)
        fr = jnp.maximum(
            jnp.dot(wf_t, re_t, preferred_element_type=jnp.float32) + bf, 0.0)

        # ---- fused 1x1-conv heads: one lane-dense MXU matmul per image -----
        outl = jnp.dot(whl, fl, preferred_element_type=jnp.float32) + bhl
        outr = jnp.dot(whr, fr, preferred_element_type=jnp.float32) + bhr

        obj_ref[0] = outl[0:K_OBJ, :]
        fac_ref[0] = outl[K_OBJ:K_OBJ + K_FAC, :]
        cl_ref[0] = outl[K_OBJ + K_FAC:K_OBJ + K_FAC + 1, :]
        facr_ref[0] = outr[0:K_FAC, :]
        cr_ref[0] = outr[K_FAC:K_FAC + 1, :]

        # ---- disparity: band-limited correlation + masked soft-argmin ------
        # corr[d, m] = <fl[:, m], fr[:, m-d]>  for d in [0, MAX_DISP)
        # (pltpu.roll shifts within the flattened row tile; wrapped lanes at
        #  w < d are explicitly masked below, so wrap-around never leaks in.)
        corr_rows = []
        for d in range(MAX_DISP):
            fr_d = fr if d == 0 else pltpu.roll(fr, shift=d, axis=1)
            corr_rows.append(jnp.sum(fl * fr_d, axis=0, keepdims=True))
        corr = jnp.concatenate(corr_rows, axis=0)            # (MAX_DISP, TM)

        col = lax.broadcasted_iota(jnp.int32, (MAX_DISP, TM), 1) % W
        drow = lax.broadcasted_iota(jnp.int32, (MAX_DISP, TM), 0)
        valid = col >= drow                                   # w >= d

        logits = jnp.where(valid, corr, jnp.float32(-1e30))
        mx = jnp.max(logits, axis=0, keepdims=True)           # (1, TM)
        # 1/sqrt(C) scale folded into the exp argument; invalid rows underflow
        # to exactly 0.  d=0 is always valid so the denominator is >= 1.
        e = jnp.exp((logits - mx) * inv_sqrt_c)
        s = jnp.sum(e, axis=0, keepdims=True)
        num = jnp.sum(e * drow.astype(jnp.float32), axis=0, keepdims=True)
        disp_ref[0] = num * pl.reciprocal(s, approx=True)     # (1, TM)

    ev_spec = pl.BlockSpec((1, C_IN, TM), lambda b, r: (b, 0, r))
    p_spec = pl.BlockSpec((P_ROWS, P_COLS), lambda b, r: (0, 0))

    def out_spec(k):
        return pl.BlockSpec((1, k, TM), lambda b, r: (b, 0, r))

    out_shape = (
        jax.ShapeDtypeStruct((B, K_OBJ, M), jnp.float32),   # objdet
        jax.ShapeDtypeStruct((B, K_FAC, M), jnp.float32),   # facets
        jax.ShapeDtypeStruct((B, K_FAC, M), jnp.float32),   # facets right
        jax.ShapeDtypeStruct((B, 1, M), jnp.float32),       # concentrate left
        jax.ShapeDtypeStruct((B, 1, M), jnp.float32),       # concentrate right
        jax.ShapeDtypeStruct((B, 1, M), jnp.float32),       # disparity
    )

    obj, fac, facr, cl, cr, disp = pl.pallas_call(
        kernel,
        out_shape=out_shape,
        grid_spec=pltpu.PrefetchScalarGridSpec(
            num_scalar_prefetch=0,
            grid=(B, n_row_tiles),
            in_specs=[ev_spec, ev_spec, p_spec],
            out_specs=[out_spec(K_OBJ), out_spec(K_FAC), out_spec(K_FAC),
                       out_spec(1), out_spec(1), out_spec(1)],
        ),
        compiler_params=pltpu.CompilerParams(
            dimension_semantics=("parallel", "parallel"),
            vmem_limit_bytes=40 * 1024 * 1024),
    )(le, re, p)

    # Outputs are already channel-major (NCHW); only free reshapes remain.
    return (obj.reshape(B, K_OBJ, H, W),
            fac.reshape(B, K_FAC, H, W),
            facr.reshape(B, K_FAC, H, W),
            cl.reshape(B, 1, H, W),
            cr.reshape(B, 1, H, W),
            disp.reshape(B, H, W))


if __name__ == "__main__":
    key = jax.random.PRNGKey(0)
    k_l, k_r = jax.random.split(key)
    B, H, W = 2, 16, 16
    left_event = jax.random.normal(k_l, (B, C_IN, H, W), jnp.float32)
    right_event = jax.random.normal(k_r, (B, C_IN, H, W), jnp.float32)
    h_cam = jnp.array(float(H), jnp.float32)
    w_cam = jnp.array(float(W), jnp.float32)

    params = _init_params()
    outs = onnx_style_network_forward(left_event, right_event, h_cam, w_cam,
                                      params)
    outs = jax.block_until_ready(outs)

    expected_shapes = [
        (B, K_OBJ, H, W), (B, K_FAC, H, W), (B, K_FAC, H, W),
        (B, 1, H, W), (B, 1, H, W), (B, H, W),
    ]
    assert [tuple(o.shape) for o in outs] == expected_shapes
    assert all(bool(jnp.all(jnp.isfinite(o))) for o in outs)
    disparity = outs[-1]
    assert bool(jnp.all(disparity >= 0.0))
    assert bool(jnp.all(disparity <= MAX_DISP - 1 + 1e-3))
    # TODO(synk): the wrapped `self.model` architecture is unspecified upstream;
    # this is a synthetic stand-in with the same I/O contract.
    print("KERNEL_OK")
</pallas_src>

<mosaic_0001>
module attributes {stable_mosaic.version = 11 : i64} {
  func.func @kernel(%arg0: i32, %arg1: i32, %arg2: memref<1x4x128xf32, #tpu.memory_space<vmem>>, %arg3: memref<1x4x128xf32, #tpu.memory_space<vmem>>, %arg4: memref<80x33xf32, #tpu.memory_space<vmem>>, %arg5: memref<1x16x128xf32, #tpu.memory_space<vmem>>, %arg6: memref<1x8x128xf32, #tpu.memory_space<vmem>>, %arg7: memref<1x8x128xf32, #tpu.memory_space<vmem>>, %arg8: memref<1x1x128xf32, #tpu.memory_space<vmem>>, %arg9: memref<1x1x128xf32, #tpu.memory_space<vmem>>, %arg10: memref<1x1x128xf32, #tpu.memory_space<vmem>>) attributes {dimension_semantics = [#tpu.dimension_semantics<parallel>, #tpu.dimension_semantics<parallel>], iteration_bounds = array<i64: 2, 2>, scalar_prefetch = 0 : i64, scratch_operands = 0 : i64, tpu.core_type = #tpu.core_type<tc>, window_params = [{transform_indices = @transform_0, window_bounds = array<i64: 1, 4, 128>}, {transform_indices = @transform_1, window_bounds = array<i64: 1, 4, 128>}, {pipeline_mode = #tpu.pipeline_mode<synchronous>, transform_indices = @transform_2, window_bounds = array<i64: 80, 33>}, {transform_indices = @transform_3, window_bounds = array<i64: 1, 16, 128>}, {transform_indices = @transform_4, window_bounds = array<i64: 1, 8, 128>}, {transform_indices = @transform_5, window_bounds = array<i64: 1, 8, 128>}, {transform_indices = @transform_6, window_bounds = array<i64: 1, 1, 128>}, {transform_indices = @transform_7, window_bounds = array<i64: 1, 1, 128>}, {transform_indices = @transform_8, window_bounds = array<i64: 1, 1, 128>}]} {
    %c0 = arith.constant 0 : index
    %c0_0 = arith.constant 0 : index
    %c0_1 = arith.constant 0 : index
    %0 = vector.load %arg2[%c0, %c0_0, %c0_1] : memref<1x4x128xf32, #tpu.memory_space<vmem>>, vector<1x4x128xf32>
    %1 = vector.shape_cast %0 : vector<1x4x128xf32> to vector<4x128xf32>
    %c0_2 = arith.constant 0 : index
    %c0_3 = arith.constant 0 : index
    %c0_4 = arith.constant 0 : index
    %2 = vector.load %arg3[%c0_2, %c0_3, %c0_4] : memref<1x4x128xf32, #tpu.memory_space<vmem>>, vector<1x4x128xf32>
    %3 = vector.shape_cast %2 : vector<1x4x128xf32> to vector<4x128xf32>
    %c0_5 = arith.constant 0 : index
    %c0_6 = arith.constant 0 : index
    %4 = vector.load %arg4[%c0_5, %c0_6] : memref<80x33xf32, #tpu.memory_space<vmem>>, vector<80x33xf32>
    %5 = vector.extract_strided_slice %4 {offsets = [0, 0], sizes = [32, 4], strides = [1, 1]} : vector<80x33xf32> to vector<32x4xf32>
    %6 = vector.extract_strided_slice %4 {offsets = [0, 32], sizes = [32, 1], strides = [1, 1]} : vector<80x33xf32> to vector<32x1xf32>
    %7 = vector.extract_strided_slice %4 {offsets = [32, 0], sizes = [32, 32], strides = [1, 1]} : vector<80x33xf32> to vector<32x32xf32>
    %8 = vector.extract_strided_slice %4 {offsets = [32, 32], sizes = [32, 1], strides = [1, 1]} : vector<80x33xf32> to vector<32x1xf32>
    %9 = vector.extract_strided_slice %4 {offsets = [64, 0], sizes = [16, 32], strides = [1, 1]} : vector<80x33xf32> to vector<16x32xf32>
    %10 = vector.extract_strided_slice %4 {offsets = [64, 32], sizes = [16, 1], strides = [1, 1]} : vector<80x33xf32> to vector<16x1xf32>
    %cst = arith.constant dense<0.000000e+00> : vector<32x128xf32>
    %11 = tpu.matmul %5, %1, %cst {dimension_numbers = #tpu.dot_dimension_numbers<[1], [0], [0], [1], [0, 0, 1, 1], [], []>} : vector<32x4xf32>, vector<4x128xf32>, vector<32x128xf32> -> vector<32x128xf32>
    %12 = vector.broadcast %6 : vector<32x1xf32> to vector<32x128xf32>
    %13 = arith.addf %11, %12 : vector<32x128xf32>
    %cst_7 = arith.constant 0.000000e+00 : f32
    %14 = vector.broadcast %cst_7 : f32 to vector<32x128xf32>
    %15 = arith.maximumf %13, %14 : vector<32x128xf32>
    %cst_8 = arith.constant dense<0.000000e+00> : vector<32x128xf32>
    %16 = tpu.matmul %5, %3, %cst_8 {dimension_numbers = #tpu.dot_dimension_numbers<[1], [0], [0], [1], [0, 0, 1, 1], [], []>} : vector<32x4xf32>, vector<4x128xf32>, vector<32x128xf32> -> vector<32x128xf32>
    %17 = vector.broadcast %6 : vector<32x1xf32> to vector<32x128xf32>
    %18 = arith.addf %16, %17 : vector<32x128xf32>
    %cst_9 = arith.constant 0.000000e+00 : f32
    %19 = vector.broadcast %cst_9 : f32 to vector<32x128xf32>
    %20 = arith.maximumf %18, %19 : vector<32x128xf32>
    %cst_10 = arith.constant dense<0.000000e+00> : vector<32x128xf32>
    %21 = tpu.matmul %7, %15, %cst_10 {dimension_numbers = #tpu.dot_dimension_numbers<[1], [0], [0], [1], [0, 0, 1, 1], [], []>} : vector<32x32xf32>, vector<32x128xf32>, vector<32x128xf32> -> vector<32x128xf32>
    %22 = vector.broadcast %8 : vector<32x1xf32> to vector<32x128xf32>
    %23 = arith.addf %21, %22 : vector<32x128xf32>
    %cst_11 = arith.constant dense<0.000000e+00> : vector<16x128xf32>
    %24 = tpu.matmul %9, %20, %cst_11 {dimension_numbers = #tpu.dot_dimension_numbers<[1], [0], [0], [1], [0, 0, 1, 1], [], []>} : vector<16x32xf32>, vector<32x128xf32>, vector<16x128xf32> -> vector<16x128xf32>
    %25 = vector.broadcast %10 : vector<16x1xf32> to vector<16x128xf32>
    %26 = arith.addf %24, %25 : vector<16x128xf32>
    %27 = vector.extract_strided_slice %23 {offsets = [0, 0], sizes = [16, 128], strides = [1, 1]} : vector<32x128xf32> to vector<16x128xf32>
    %c0_12 = arith.constant 0 : index
    %c0_13 = arith.constant 0 : index
    %c0_14 = arith.constant 0 : index
    %28 = vector.load %arg5[%c0_12, %c0_13, %c0_14] : memref<1x16x128xf32, #tpu.memory_space<vmem>>, vector<1x16x128xf32>
    %29 = vector.shape_cast %28 : vector<1x16x128xf32> to vector<16x128xf32>
    %30 = vector.shape_cast %27 : vector<16x128xf32> to vector<1x16x128xf32>
    tpu.vector_store %arg5[%c0_12, %c0_13, %c0_14], %30 {strides = array<i32>} : memref<1x16x128xf32, #tpu.memory_space<vmem>>, vector<1x16x128xf32>,
    %31 = vector.extract_strided_slice %23 {offsets = [16, 0], sizes = [8, 128], strides = [1, 1]} : vector<32x128xf32> to vector<8x128xf32>
    %c0_15 = arith.constant 0 : index
    %c0_16 = arith.constant 0 : index
    %c0_17 = arith.constant 0 : index
    %32 = vector.load %arg6[%c0_15, %c0_16, %c0_17] : memref<1x8x128xf32, #tpu.memory_space<vmem>>, vector<1x8x128xf32>
    %33 = vector.shape_cast %32 : vector<1x8x128xf32> to vector<8x128xf32>
    %34 = vector.shape_cast %31 : vector<8x128xf32> to vector<1x8x128xf32>
    tpu.vector_store %arg6[%c0_15, %c0_16, %c0_17], %34 {strides = array<i32>} : memref<1x8x128xf32, #tpu.memory_space<vmem>>, vector<1x8x128xf32>,
    %35 = vector.extract_strided_slice %23 {offsets = [24, 0], sizes = [1, 128], strides = [1, 1]} : vector<32x128xf32> to vector<1x128xf32>
    %c0_18 = arith.constant 0 : index
    %c0_19 = arith.constant 0 : index
    %c0_20 = arith.constant 0 : index
    %36 = vector.load %arg8[%c0_18, %c0_19, %c0_20] : memref<1x1x128xf32, #tpu.memory_space<vmem>>, vector<1x1x128xf32>
    %37 = vector.shape_cast %36 : vector<1x1x128xf32> to vector<1x128xf32>
    %38 = vector.shape_cast %35 : vector<1x128xf32> to vector<1x1x128xf32>
    tpu.vector_store %arg8[%c0_18, %c0_19, %c0_20], %38 {strides = array<i32>} : memref<1x1x128xf32, #tpu.memory_space<vmem>>, vector<1x1x128xf32>,
    %39 = vector.extract_strided_slice %26 {offsets = [0, 0], sizes = [8, 128], strides = [1, 1]} : vector<16x128xf32> to vector<8x128xf32>
    %c0_21 = arith.constant 0 : index
    %c0_22 = arith.constant 0 : index
    %c0_23 = arith.constant 0 : index
    %40 = vector.load %arg7[%c0_21, %c0_22, %c0_23] : memref<1x8x128xf32, #tpu.memory_space<vmem>>, vector<1x8x128xf32>
    %41 = vector.shape_cast %40 : vector<1x8x128xf32> to vector<8x128xf32>
    %42 = vector.shape_cast %39 : vector<8x128xf32> to vector<1x8x128xf32>
    tpu.vector_store %arg7[%c0_21, %c0_22, %c0_23], %42 {strides = array<i32>} : memref<1x8x128xf32, #tpu.memory_space<vmem>>, vector<1x8x128xf32>,
    %43 = vector.extract_strided_slice %26 {offsets = [8, 0], sizes = [1, 128], strides = [1, 1]} : vector<16x128xf32> to vector<1x128xf32>
    %c0_24 = arith.constant 0 : index
    %c0_25 = arith.constant 0 : index
    %c0_26 = arith.constant 0 : index
    %44 = vector.load %arg9[%c0_24, %c0_25, %c0_26] : memref<1x1x128xf32, #tpu.memory_space<vmem>>, vector<1x1x128xf32>
    %45 = vector.shape_cast %44 : vector<1x1x128xf32> to vector<1x128xf32>
    %46 = vector.shape_cast %43 : vector<1x128xf32> to vector<1x1x128xf32>
    tpu.vector_store %arg9[%c0_24, %c0_25, %c0_26], %46 {strides = array<i32>} : memref<1x1x128xf32, #tpu.memory_space<vmem>>, vector<1x1x128xf32>,
    %47 = arith.mulf %15, %20 : vector<32x128xf32>
    %cst_27 = arith.constant dense<0.000000e+00> : vector<128xf32>
    %48 = vector.multi_reduction <add>, %47, %cst_27 [0] : vector<32x128xf32> to vector<128xf32>
    %49 = vector.shape_cast %48 : vector<128xf32> to vector<1x128xf32>
    %c1_i32 = arith.constant 1 : i32
    %50 = tpu.dynamic_rotate %20 by %c1_i32 dim 1 : vector<32x128xf32>, i32 -> vector<32x128xf32>
    %51 = arith.mulf %15, %50 : vector<32x128xf32>
    %cst_28 = arith.constant dense<0.000000e+00> : vector<128xf32>
    %52 = vector.multi_reduction <add>, %51, %cst_28 [0] : vector<32x128xf32> to vector<128xf32>
    %53 = vector.shape_cast %52 : vector<128xf32> to vector<1x128xf32>
    %c2_i32 = arith.constant 2 : i32
    %54 = tpu.dynamic_rotate %20 by %c2_i32 dim 1 : vector<32x128xf32>, i32 -> vector<32x128xf32>
    %55 = arith.mulf %15, %54 : vector<32x128xf32>
    %cst_29 = arith.constant dense<0.000000e+00> : vector<128xf32>
    %56 = vector.multi_reduction <add>, %55, %cst_29 [0] : vector<32x128xf32> to vector<128xf32>
    %57 = vector.shape_cast %56 : vector<128xf32> to vector<1x128xf32>
    %c3_i32 = arith.constant 3 : i32
    %58 = tpu.dynamic_rotate %20 by %c3_i32 dim 1 : vector<32x128xf32>, i32 -> vector<32x128xf32>
    %59 = arith.mulf %15, %58 : vector<32x128xf32>
    %cst_30 = arith.constant dense<0.000000e+00> : vector<128xf32>
    %60 = vector.multi_reduction <add>, %59, %cst_30 [0] : vector<32x128xf32> to vector<128xf32>
    %61 = vector.shape_cast %60 : vector<128xf32> to vector<1x128xf32>
    %c4_i32 = arith.constant 4 : i32
    %62 = tpu.dynamic_rotate %20 by %c4_i32 dim 1 : vector<32x128xf32>, i32 -> vector<32x128xf32>
    %63 = arith.mulf %15, %62 : vector<32x128xf32>
    %cst_31 = arith.constant dense<0.000000e+00> : vector<128xf32>
    %64 = vector.multi_reduction <add>, %63, %cst_31 [0] : vector<32x128xf32> to vector<128xf32>
    %65 = vector.shape_cast %64 : vector<128xf32> to vector<1x128xf32>
    %c5_i32 = arith.constant 5 : i32
    %66 = tpu.dynamic_rotate %20 by %c5_i32 dim 1 : vector<32x128xf32>, i32 -> vector<32x128xf32>
    %67 = arith.mulf %15, %66 : vector<32x128xf32>
    %cst_32 = arith.constant dense<0.000000e+00> : vector<128xf32>
    %68 = vector.multi_reduction <add>, %67, %cst_32 [0] : vector<32x128xf32> to vector<128xf32>
    %69 = vector.shape_cast %68 : vector<128xf32> to vector<1x128xf32>
    %c6_i32 = arith.constant 6 : i32
    %70 = tpu.dynamic_rotate %20 by %c6_i32 dim 1 : vector<32x128xf32>, i32 -> vector<32x128xf32>
    %71 = arith.mulf %15, %70 : vector<32x128xf32>
    %cst_33 = arith.constant dense<0.000000e+00> : vector<128xf32>
    %72 = vector.multi_reduction <add>, %71, %cst_33 [0] : vector<32x128xf32> to vector<128xf32>
    %73 = vector.shape_cast %72 : vector<128xf32> to vector<1x128xf32>
    %c7_i32 = arith.constant 7 : i32
    %74 = tpu.dynamic_rotate %20 by %c7_i32 dim 1 : vector<32x128xf32>, i32 -> vector<32x128xf32>
    %75 = arith.mulf %15, %74 : vector<32x128xf32>
    %cst_34 = arith.constant dense<0.000000e+00> : vector<128xf32>
    %76 = vector.multi_reduction <add>, %75, %cst_34 [0] : vector<32x128xf32> to vector<128xf32>
    %77 = vector.shape_cast %76 : vector<128xf32> to vector<1x128xf32>
    %78 = tpu.concatenate %49, %53, %57, %61, %65, %69, %73, %77 in 0 : vector<1x128xf32>, vector<1x128xf32>, vector<1x128xf32>, vector<1x128xf32>, vector<1x128xf32>, vector<1x128xf32>, vector<1x128xf32>, vector<1x128xf32> -> vector<8x128xf32>
    %79 = tpu.iota {dimensions = array<i32: 1>} : vector<8x128xi32>
    %c16_i32 = arith.constant 16 : i32
    %c0_i32 = arith.constant 0 : i32
    %80 = arith.cmpi eq, %c16_i32, %c0_i32 : i32
    %c1_i32_35 = arith.constant 1 : i32
    %81 = arith.select %80, %c1_i32_35, %c16_i32 : i32
    %82 = vector.broadcast %81 : i32 to vector<8x128xi32>
    %83 = arith.remsi %79, %82 : vector<8x128xi32>
    %c0_i32_36 = arith.constant 0 : i32
    %84 = vector.broadcast %c0_i32_36 : i32 to vector<8x128xi32>
    %85 = arith.cmpi ne, %83, %84 : vector<8x128xi32>
    %c0_i32_37 = arith.constant 0 : i32
    %86 = vector.broadcast %c0_i32_37 : i32 to vector<8x128xi32>
    %87 = arith.cmpi slt, %83, %86 : vector<8x128xi32>
    %c0_i32_38 = arith.constant 0 : i32
    %88 = arith.cmpi slt, %81, %c0_i32_38 : i32
    %89 = vector.broadcast %88 : i1 to vector<8x128xi1>
    %90 = vector.broadcast %89 : vector<8x128xi1> to vector<8x128xi1>
    %91 = arith.xori %87, %90 : vector<8x128xi1>
    %92 = arith.andi %91, %85 : vector<8x128xi1>
    %93 = vector.broadcast %81 : i32 to vector<8x128xi32>
    %94 = arith.addi %83, %93 : vector<8x128xi32>
    %95 = arith.select %92, %94, %83 : vector<8x128xi1>, vector<8x128xi32>
    %96 = tpu.iota {dimensions = array<i32: 0>} : vector<8x128xi32>
    %97 = arith.cmpi sge, %95, %96 : vector<8x128xi32>
    %cst_39 = arith.constant -1.000000e+30 : f32
    %98 = vector.broadcast %cst_39 : f32 to vector<8x128xf32>
    %99 = arith.select %97, %78, %98 : vector<8x128xi1>, vector<8x128xf32>
    %cst_40 = arith.constant dense<0xFF800000> : vector<128xf32>
    %100 = vector.multi_reduction <maximumf>, %99, %cst_40 [0] : vector<8x128xf32> to vector<128xf32>
    %101 = vector.shape_cast %100 : vector<128xf32> to vector<1x128xf32>
    %102 = vector.broadcast %101 : vector<1x128xf32> to vector<8x128xf32>
    %103 = arith.subf %99, %102 : vector<8x128xf32>
    %cst_41 = arith.constant 0.176776692 : f32
    %104 = vector.broadcast %cst_41 : f32 to vector<8x128xf32>
    %105 = arith.mulf %103, %104 : vector<8x128xf32>
    %106 = math.exp %105 : vector<8x128xf32>
    %cst_42 = arith.constant dense<0.000000e+00> : vector<128xf32>
    %107 = vector.multi_reduction <add>, %106, %cst_42 [0] : vector<8x128xf32> to vector<128xf32>
    %108 = vector.shape_cast %107 : vector<128xf32> to vector<1x128xf32>
    %109 = arith.sitofp %96 : vector<8x128xi32> to vector<8x128xf32>
    %110 = arith.mulf %106, %109 : vector<8x128xf32>
    %cst_43 = arith.constant dense<0.000000e+00> : vector<128xf32>
    %111 = vector.multi_reduction <add>, %110, %cst_43 [0] : vector<8x128xf32> to vector<128xf32>
    %112 = vector.shape_cast %111 : vector<128xf32> to vector<1x128xf32>
    %113 = tpu.reciprocal %108 {approx = true} : vector<1x128xf32> -> vector<1x128xf32>
    %114 = arith.mulf %112, %113 : vector<1x128xf32>
    %c0_44 = arith.constant 0 : index
    %c0_45 = arith.constant 0 : index
    %c0_46 = arith.constant 0 : index
    %115 = vector.load %arg10[%c0_44, %c0_45, %c0_46] : memref<1x1x128xf32, #tpu.memory_space<vmem>>, vector<1x1x128xf32>
    %116 = vector.shape_cast %115 : vector<1x1x128xf32> to vector<1x128xf32>
    %117 = vector.shape_cast %114 : vector<1x128xf32> to vector<1x1x128xf32>
    tpu.vector_store %arg10[%c0_44, %c0_45, %c0_46], %117 {strides = array<i32>} : memref<1x1x128xf32, #tpu.memory_space<vmem>>, vector<1x1x128xf32>,
    return
  }
  func.func @transform_0(%arg0: i32, %arg1: i32) -> (i32, i32, i32) {
    %c0_i32 = arith.constant 0 : i32
    %c0_i32_0 = arith.constant 0 : i32
    return %arg0, %c0_i32, %arg1 : i32, i32, i32
  }
  func.func @transform_1(%arg0: i32, %arg1: i32) -> (i32, i32, i32) {
    %c0_i32 = arith.constant 0 : i32
    %c0_i32_0 = arith.constant 0 : i32
    return %arg0, %c0_i32, %arg1 : i32, i32, i32
  }
  func.func @transform_2(%arg0: i32, %arg1: i32) -> (i32, i32) {
    %c0_i32 = arith.constant 0 : i32
    %c0_i32_0 = arith.constant 0 : i32
    %c0_i32_1 = arith.constant 0 : i32
    return %c0_i32, %c0_i32_0 : i32, i32
  }
  func.func @transform_3(%arg0: i32, %arg1: i32) -> (i32, i32, i32) {
    %c0_i32 = arith.constant 0 : i32
    %c0_i32_0 = arith.constant 0 : i32
    return %arg0, %c0_i32, %arg1 : i32, i32, i32
  }
  func.func @transform_4(%arg0: i32, %arg1: i32) -> (i32, i32, i32) {
    %c0_i32 = arith.constant 0 : i32
    %c0_i32_0 = arith.constant 0 : i32
    return %arg0, %c0_i32, %arg1 : i32, i32, i32
  }
  func.func @transform_5(%arg0: i32, %arg1: i32) -> (i32, i32, i32) {
    %c0_i32 = arith.constant 0 : i32
    %c0_i32_0 = arith.constant 0 : i32
    return %arg0, %c0_i32, %arg1 : i32, i32, i32
  }
  func.func @transform_6(%arg0: i32, %arg1: i32) -> (i32, i32, i32) {
    %c0_i32 = arith.constant 0 : i32
    %c0_i32_0 = arith.constant 0 : i32
    return %arg0, %c0_i32, %arg1 : i32, i32, i32
  }
  func.func @transform_7(%arg0: i32, %arg1: i32) -> (i32, i32, i32) {
    %c0_i32 = arith.constant 0 : i32
    %c0_i32_0 = arith.constant 0 : i32
    return %arg0, %c0_i32, %arg1 : i32, i32, i32
  }
  func.func @transform_8(%arg0: i32, %arg1: i32) -> (i32, i32, i32) {
    %c0_i32 = arith.constant 0 : i32
    %c0_i32_0 = arith.constant 0 : i32
    return %arg0, %c0_i32, %arg1 : i32, i32, i32
  }
}

</mosaic_0001>

<llo_original>
// kernel: tpu_custom_call.1
$region0: #{tpu_custom_call.1}
  #allocation0 [shape = 'u32[]', space=smem, size = 0x4, offset = 0x4, fixed_abs, tag = 'smem constant byte address 0x4 - core index']
  #allocation1 [shape = 'u32[144,128]{1,0:T(1,128)}', space=vmem, size = 0x12000, scoped, tag = 'internal scratch']
  %s0 = inlined_call_operand.vmem [shape: f32[2,4,256], index: 0, kind: input, shape index: {}]
  %s1 = inlined_call_operand.vmem [shape: f32[2,4,256], index: 1, kind: input, shape index: {}]
  %s2 = inlined_call_operand.vmem [shape: f32[80,33], index: 2, kind: input, shape index: {}]
  %s3 = inlined_call_operand.hbm [shape: f32[2,16,256], index: 3, kind: output, shape index: {0}]
  %s4 = inlined_call_operand.hbm [shape: f32[2,8,256], index: 4, kind: output, shape index: {1}]
  %s5 = inlined_call_operand.hbm [shape: f32[2,8,256], index: 5, kind: output, shape index: {2}]
  %s6 = inlined_call_operand.hbm [shape: f32[2,1,256], index: 6, kind: output, shape index: {3}]
  %s7 = inlined_call_operand.hbm [shape: f32[2,1,256], index: 7, kind: output, shape index: {4}]
  %s8 = inlined_call_operand.hbm [shape: f32[2,1,256], index: 8, kind: output, shape index: {5}]
  %9 = xla_tuple %s3, %s4, %s5, %s6, %s7, %s8
  %s10 = sld [smem:[#allocation0]]
  $region85: #{tpu_custom_call.1} parent=0
    _
  %s12 = ssub.s32 1, %s10
  %s13 = scalar_select 0, %s12, %s10
  $region1: #{tpu_custom_call.1} parent=0
    #allocation2 [shape = 'u8[16384]{0}', space=vmem, size = 0x4000, scoped, tag = 'output window, operand 0']
    #allocation3 [shape = 's32[2]{0}', space=sflag, size = 0x8, scoped, tag = 'scoped memory for tpu_custom_call.1']
    #allocation4 [shape = 'u8[8192]{0}', space=vmem, size = 0x2000, scoped, tag = 'output window, operand 1']
    #allocation5 [shape = 's32[2]{0}', space=sflag, size = 0x8, scoped, tag = 'scoped memory for tpu_custom_call.1']
    #allocation6 [shape = 'u8[8192]{0}', space=vmem, size = 0x2000, scoped, tag = 'output window, operand 2']
    #allocation7 [shape = 'u8[1024]{0}', space=vmem, size = 0x400, scoped, tag = 'output window, operand 3']
    #allocation8 [shape = 's32[2]{0}', space=sflag, size = 0x8, scoped, tag = 'scoped memory for tpu_custom_call.1']
    #allocation9 [shape = 'u8[1024]{0}', space=vmem, size = 0x400, scoped, tag = 'output window, operand 4']
    #allocation10 [shape = 'u8[1024]{0}', space=vmem, size = 0x400, scoped, tag = 'output window, operand 5']
    #allocation11 [shape = 's32[2]{0}', space=sflag, size = 0x8, scoped, tag = 'scoped memory for tpu_custom_call.1']
    %14 = vsyncpa [#allocation3], 0
    %s15 = scalar_lea.sflag [#allocation3], 1
    %16 = vsyncpa %s15, 0
    %17 = vsyncpa [#allocation5], 0
    %s18 = scalar_lea.sflag [#allocation5], 1
    %19 = vsyncpa %s18, 0
    %20 = vsyncpa [#allocation8], 0
    %s21 = scalar_lea.sflag [#allocation8], 1
    %22 = vsyncpa %s21, 0
    %23 = vsyncpa [#allocation11], 0
    %s24 = scalar_lea.sflag [#allocation11], 1
    %25 = vsyncpa %s24, 0
    loop: start=0, step=1, limit=6
    $region2: #{tpu_custom_call.1} parent=1 // loop_pre_header
      _
    $region3: #{tpu_custom_call.1} parent=1 // loop_header
      %s27 = sphi 0, %s31
      %p28 = scmp.ge.s32.totalorder %s27, 6
      %s34 = sphi 0, %s46
      %s35 = sphi 0, %s42
      %s36 = sphi 0, %s34
      %s37 = sphi 0, %s35
      %s38 = sphi 0, %s36
      %s39 = sphi 0, %s37
      %s51 = sphi 0, %s53
      %s54 = sphi 0, %s51
      %s55 = sphi 0, %s54
      %s71 = sphi 0, %s55
      %s79 = sphi 0, %s81
      %s82 = sphi 0, %s79
      %s83 = sphi 0, %s82
      %s99 = sphi 0, %s83
      %s103 = sphi 0, %s103
      %s105 = sphi 0, %s103
      %s106 = sphi 0, %s105
      %s120 = sphi 0, %s106
      %s128 = sphi 0, %s130
      %s131 = sphi 0, %s128
      %s132 = sphi 0, %s131
      %s148 = sphi 0, %s132
      %s156 = sphi 0, %s158
      %s159 = sphi 0, %s156
      %s160 = sphi 0, %s159
      %s176 = sphi 0, %s160
      %s184 = sphi 0, %s186
      %s187 = sphi 0, %s184
      %s188 = sphi 0, %s187
      %s204 = sphi 0, %s188
      %s212 = sphi 0, %s214
      %s215 = sphi 0, %s212
      %s216 = sphi 0, %s215
      %s232 = sphi 0, %s216
      %s240 = sphi 0, %s242
      %s243 = sphi 0, %s240
      %s244 = sphi 0, %s243
      %s260 = sphi 0, %s244
      %s268 = sphi 0, %s270
      %s271 = sphi 0, %s268
      %s272 = sphi 0, %s271
      %s288 = sphi 0, %s272
    $region4: #{tpu_custom_call.1} parent=1 // loop_header_branch
      %30 = sbr.rel (%p28) target = $region8
    $region5: #{tpu_custom_call.1} parent=1 // loop_body
      %s32 = ssub.s32 %s27, 1
      %s33 = ssub.s32 %s27, 2
      %s40 = sadd.s32 1, %s35
      %p41 = scmp.ge.s32.totalorder %s40, 2
      %s42 = scalar_select %p41, 0, %s40
      %s43 = sadd.s32 1, %s34
      %s44 = scalar_select %p41, %s43, %s34
      %p45 = scmp.ge.s32.totalorder %s44, 2
      %s46 = scalar_select %p45, 0, %s44
      %s47 = ssub.s32 %s34, %s46
      %s48 = ssub.s32 %s35, %s42
      %s49 = sor.u32 %s47, %s48
      %p50 = scmp.eq.s32.totalorder %s49, 0
      %s52 = sadd.s32 %s51, 1
      %s53 = scalar_select %p50, %s51, %s52
      %p56 = pneg %p50
      %p57 = scmp.eq.s32.totalorder %s27, 3
      %p58 = por %p56, %p57
      %p59 = scmp.ne.s32.totalorder %s51, %s54
      %p60 = scmp.eq.s32.totalorder %s27, 0
      %p61 = por %p59, %p60
      %p62 = scmp.ne.s32.totalorder %s51, %s54
      %p63 = scmp.eq.s32.totalorder %s32, 3
      %p64 = por %p62, %p63
      %p65 = scmp.ne.s32.totalorder %s54, %s55
      %p66 = scmp.eq.s32.totalorder %s32, 0
      %p67 = por %p65, %p66
      %p68 = scmp.ne.s32.totalorder %s54, %s55
      %p69 = scmp.eq.s32.totalorder %s33, 3
      %p70 = por %p68, %p69
      %p72 = scmp.ne.s32.totalorder %s55, %s71
      %p73 = scmp.eq.s32.totalorder %s33, 0
      %p74 = por %p72, %p73
      %s75 = ssub.s32 %s34, %s46
      %s76 = ssub.s32 %s35, %s42
      %s77 = sor.u32 %s75, %s76
      %p78 = scmp.eq.s32.totalorder %s77, 0
      %s80 = sadd.s32 %s79, 1
      %s81 = scalar_select %p78, %s79, %s80
      %p84 = pneg %p78
      %p85 = scmp.eq.s32.totalorder %s27, 3
      %p86 = por %p84, %p85
      %p87 = scmp.ne.s32.totalorder %s79, %s82
      %p88 = scmp.eq.s32.totalorder %s27, 0
      %p89 = por %p87, %p88
      %p90 = scmp.ne.s32.totalorder %s79, %s82
      %p91 = scmp.eq.s32.totalorder %s32, 3
      %p92 = por %p90, %p91
      %p93 = scmp.ne.s32.totalorder %s82, %s83
      %p94 = scmp.eq.s32.totalorder %s32, 0
      %p95 = por %p93, %p94
      %p96 = scmp.ne.s32.totalorder %s82, %s83
      %p97 = scmp.eq.s32.totalorder %s33, 3
      %p98 = por %p96, %p97
      %p100 = scmp.ne.s32.totalorder %s83, %s99
      %p101 = scmp.eq.s32.totalorder %s33, 0
      %p102 = por %p100, %p101
      %s104 = sadd.s32 %s103, 1
      %p107 = scmp.eq.s32.totalorder %s27, 3
      %p108 = scmp.ne.s32.totalorder %s103, %s105
      %p109 = scmp.eq.s32.totalorder %s27, 0
      %p110 = por %p108, %p109
      %p111 = scmp.ne.s32.totalorder %s103, %s105
      %p112 = scmp.eq.s32.totalorder %s32, 3
      %p113 = por %p111, %p112
      %p114 = scmp.ne.s32.totalorder %s105, %s106
      %p115 = scmp.eq.s32.totalorder %s32, 0
      %p116 = por %p114, %p115
      %p117 = scmp.ne.s32.totalorder %s105, %s106
      %p118 = scmp.eq.s32.totalorder %s33, 3
      %p119 = por %p117, %p118
      %p121 = scmp.ne.s32.totalorder %s106, %s120
      %p122 = scmp.eq.s32.totalorder %s33, 0
      %p123 = por %p121, %p122
      %s124 = ssub.s32 %s34, %s46
      %s125 = ssub.s32 %s35, %s42
      %s126 = sor.u32 %s124, %s125
      %p127 = scmp.eq.s32.totalorder %s126, 0
      %s129 = sadd.s32 %s128, 1
      %s130 = scalar_select %p127, %s128, %s129
      %p133 = pneg %p127
      %p134 = scmp.eq.s32.totalorder %s27, 3
      %p135 = por %p133, %p134
      %p136 = scmp.ne.s32.totalorder %s128, %s131
      %p137 = scmp.eq.s32.totalorder %s27, 0
      %p138 = por %p136, %p137
      %p139 = scmp.ne.s32.totalorder %s128, %s131
      %p140 = scmp.eq.s32.totalorder %s32, 3
      %p141 = por %p139, %p140
      %p142 = scmp.ne.s32.totalorder %s131, %s132
      %p143 = scmp.eq.s32.totalorder %s32, 0
      %p144 = por %p142, %p143
      %p145 = scmp.ne.s32.totalorder %s131, %s132
      %p146 = scmp.eq.s32.totalorder %s33, 3
      %p147 = por %p145, %p146
      %p149 = scmp.ne.s32.totalorder %s132, %s148
      %p150 = scmp.eq.s32.totalorder %s33, 0
      %p151 = por %p149, %p150
      %s152 = ssub.s32 %s34, %s46
      %s153 = ssub.s32 %s35, %s42
      %s154 = sor.u32 %s152, %s153
      %p155 = scmp.eq.s32.totalorder %s154, 0
      %s157 = sadd.s32 %s156, 1
      %s158 = scalar_select %p155, %s156, %s157
      %p161 = pneg %p155
      %p162 = scmp.eq.s32.totalorder %s27, 3
      %p163 = por %p161, %p162
      %p164 = scmp.ne.s32.totalorder %s156, %s159
      %p165 = scmp.eq.s32.totalorder %s27, 0
      %p166 = por %p164, %p165
      %p167 = scmp.ne.s32.totalorder %s156, %s159
      %p168 = scmp.eq.s32.totalorder %s32, 3
      %p169 = por %p167, %p168
      %p170 = scmp.ne.s32.totalorder %s159, %s160
      %p171 = scmp.eq.s32.totalorder %s32, 0
      %p172 = por %p170, %p171
      %p173 = scmp.ne.s32.totalorder %s159, %s160
      %p174 = scmp.eq.s32.totalorder %s33, 3
      %p175 = por %p173, %p174
      %p177 = scmp.ne.s32.totalorder %s160, %s176
      %p178 = scmp.eq.s32.totalorder %s33, 0
      %p179 = por %p177, %p178
      %s180 = ssub.s32 %s34, %s46
      %s181 = ssub.s32 %s35, %s42
      %s182 = sor.u32 %s180, %s181
      %p183 = scmp.eq.s32.totalorder %s182, 0
      %s185 = sadd.s32 %s184, 1
      %s186 = scalar_select %p183, %s184, %s185
      %p189 = pneg %p183
      %p190 = scmp.eq.s32.totalorder %s27, 3
      %p191 = por %p189, %p190
      %p192 = scmp.ne.s32.totalorder %s184, %s187
      %p193 = scmp.eq.s32.totalorder %s27, 0
      %p194 = por %p192, %p193
      %p195 = scmp.ne.s32.totalorder %s184, %s187
      %p196 = scmp.eq.s32.totalorder %s32, 3
      %p197 = por %p195, %p196
      %p198 = scmp.ne.s32.totalorder %s187, %s188
      %p199 = scmp.eq.s32.totalorder %s32, 0
      %p200 = por %p198, %p199
      %p201 = scmp.ne.s32.totalorder %s187, %s188
      %p202 = scmp.eq.s32.totalorder %s33, 3
      %p203 = por %p201, %p202
      %p205 = scmp.ne.s32.totalorder %s188, %s204
      %p206 = scmp.eq.s32.totalorder %s33, 0
      %p207 = por %p205, %p206
      %s208 = ssub.s32 %s34, %s46
      %s209 = ssub.s32 %s35, %s42
      %s210 = sor.u32 %s208, %s209
      %p211 = scmp.eq.s32.totalorder %s210, 0
      %s213 = sadd.s32 %s212, 1
      %s214 = scalar_select %p211, %s212, %s213
      %p217 = pneg %p211
      %p218 = scmp.eq.s32.totalorder %s27, 3
      %p219 = por %p217, %p218
      %p220 = scmp.ne.s32.totalorder %s212, %s215
      %p221 = scmp.eq.s32.totalorder %s27, 0
      %p222 = por %p220, %p221
      %p223 = scmp.ne.s32.totalorder %s212, %s215
      %p224 = scmp.eq.s32.totalorder %s32, 3
      %p225 = por %p223, %p224
      %p226 = scmp.ne.s32.totalorder %s215, %s216
      %p227 = scmp.eq.s32.totalorder %s32, 0
      %p228 = por %p226, %p227
      %p229 = scmp.ne.s32.totalorder %s215, %s216
      %p230 = scmp.eq.s32.totalorder %s33, 3
      %p231 = por %p229, %p230
      %p233 = scmp.ne.s32.totalorder %s216, %s232
      %p234 = scmp.eq.s32.totalorder %s33, 0
      %p235 = por %p233, %p234
      %s236 = ssub.s32 %s34, %s46
      %s237 = ssub.s32 %s35, %s42
      %s238 = sor.u32 %s236, %s237
      %p239 = scmp.eq.s32.totalorder %s238, 0
      %s241 = sadd.s32 %s240, 1
      %s242 = scalar_select %p239, %s240, %s241
      %p245 = pneg %p239
      %p246 = scmp.eq.s32.totalorder %s27, 3
      %p247 = por %p245, %p246
      %p248 = scmp.ne.s32.totalorder %s240, %s243
      %p249 = scmp.eq.s32.totalorder %s27, 0
      %p250 = por %p248, %p249
      %p251 = scmp.ne.s32.totalorder %s240, %s243
      %p252 = scmp.eq.s32.totalorder %s32, 3
      %p253 = por %p251, %p252
      %p254 = scmp.ne.s32.totalorder %s243, %s244
      %p255 = scmp.eq.s32.totalorder %s32, 0
      %p256 = por %p254, %p255
      %p257 = scmp.ne.s32.totalorder %s243, %s244
      %p258 = scmp.eq.s32.totalorder %s33, 3
      %p259 = por %p257, %p258
      %p261 = scmp.ne.s32.totalorder %s244, %s260
      %p262 = scmp.eq.s32.totalorder %s33, 0
      %p263 = por %p261, %p262
      %s264 = ssub.s32 %s34, %s46
      %s265 = ssub.s32 %s35, %s42
      %s266 = sor.u32 %s264, %s265
      %p267 = scmp.eq.s32.totalorder %s266, 0
      %s269 = sadd.s32 %s268, 1
      %s270 = scalar_select %p267, %s268, %s269
      %p273 = pneg %p267
      %p274 = scmp.eq.s32.totalorder %s27, 3
      %p275 = por %p273, %p274
      %p276 = scmp.ne.s32.totalorder %s268, %s271
      %p277 = scmp.eq.s32.totalorder %s27, 0
      %p278 = por %p276, %p277
      %p279 = scmp.ne.s32.totalorder %s268, %s271
      %p280 = scmp.eq.s32.totalorder %s32, 3
      %p281 = por %p279, %p280
      %p282 = scmp.ne.s32.totalorder %s271, %s272
      %p283 = scmp.eq.s32.totalorder %s32, 0
      %p284 = por %p282, %p283
      %p285 = scmp.ne.s32.totalorder %s271, %s272
      %p286 = scmp.eq.s32.totalorder %s33, 3
      %p287 = por %p285, %p286
      %p289 = scmp.ne.s32.totalorder %s272, %s288
      %p290 = scmp.eq.s32.totalorder %s33, 0
      %p291 = por %p289, %p290
      %p292 = scmp.le.s32.totalorder 1, %s27
      %p293 = scmp.lt.s32.totalorder %s27, 5
      %p294 = pnand %p292, %p293
      %p295 = pneg %p294
      // Predicated region
      $region9: #{tpu_custom_call.1} parent=5 // pred_check
        _
      $region10: #{tpu_custom_call.1} parent=5 // pred_check_branch
        %297 = sbr.rel (%p294) target = $region12
      $region11: #{tpu_custom_call.1} parent=5 // pred_region
        %s298 = ssub.s32 %s27, 1
        // Predicated region
        $region13: #{tpu_custom_call.1} parent=11 // pred_check
          %p299 = pneg %p116
        $region14: #{tpu_custom_call.1} parent=11 // pred_check_branch
          %301 = sbr.rel (%p299) target = $region16
        $region15: #{tpu_custom_call.1} parent=11 // pred_region
          _
        $region16: #{tpu_custom_call.1} parent=11 // pred_fallthru
          _
      $region12: #{tpu_custom_call.1} parent=5 // pred_fallthru
        _
      %p302 = scmp.lt.s32.totalorder %s27, 4
      // Predicated region
      $region17: #{tpu_custom_call.1} parent=5 // pred_check
        %p303 = pneg %p302
      $region18: #{tpu_custom_call.1} parent=5 // pred_check_branch
        %305 = sbr.rel (%p303) target = $region20
      $region19: #{tpu_custom_call.1} parent=5 // pred_region
        // Predicated region
        $region21: #{tpu_custom_call.1} parent=19 // pred_check
          %p306 = pneg %p61
        $region22: #{tpu_custom_call.1} parent=19 // pred_check_branch
          %308 = sbr.rel (%p306) target = $region24
        $region23: #{tpu_custom_call.1} parent=19 // pred_region
          %p309 = scmp.lt.s32.totalorder %s34, 1
          %s310 = scalar_select %p309, %s34, 1
          %p311 = scmp.lt.s32.totalorder %s35, 1
          %s312 = scalar_select %p311, %s35, 1
          %s313 = smul.addr %s310, 2
          %s314 = sadd.s32 %s312, %s313
          %s315 = smul.addr %s314, 4
          %s316 = scalar_lea.vmem %s0, %s315
        $region24: #{tpu_custom_call.1} parent=19 // pred_fallthru
          _
        // Predicated region
        $region25: #{tpu_custom_call.1} parent=19 // pred_check
          %p317 = pneg %p89
        $region26: #{tpu_custom_call.1} parent=19 // pred_check_branch
          %319 = sbr.rel (%p317) target = $region28
        $region27: #{tpu_custom_call.1} parent=19 // pred_region
          %p320 = scmp.lt.s32.totalorder %s34, 1
          %s321 = scalar_select %p320, %s34, 1
          %p322 = scmp.lt.s32.totalorder %s35, 1
          %s323 = scalar_select %p322, %s35, 1
          %s324 = smul.addr %s321, 2
          %s325 = sadd.s32 %s323, %s324
          %s326 = smul.addr %s325, 4
          %s327 = scalar_lea.vmem %s1, %s326
        $region28: #{tpu_custom_call.1} parent=19 // pred_fallthru
          _
      $region20: #{tpu_custom_call.1} parent=5 // pred_fallthru
        _
      %p328 = scmp.le.s32.totalorder 1, %s27
      %p329 = scmp.lt.s32.totalorder %s27, 5
      %p330 = pnand %p328, %p329
      %p331 = pneg %p330
      // Predicated region
      $region29: #{tpu_custom_call.1} parent=5 // pred_check
        _
      $region30: #{tpu_custom_call.1} parent=5 // pred_check_branch
        %333 = sbr.rel (%p330) target = $region32
      $region31: #{tpu_custom_call.1} parent=5 // pred_region
        %s334 = ssub.s32 %s27, 1
        %p335 = scmp.lt.s32.totalorder %s36, 1
        %s336 = scalar_select %p335, %s36, 1
        %p337 = scmp.lt.s32.totalorder %s37, 1
        %s338 = scalar_select %p337, %s37, 1
        %s339 = smul.addr %s336, 2
        %s340 = sadd.s32 %s338, %s339
        %s341 = smul.addr %s340, 4
        %s342 = scalar_lea.vmem %s0, %s341
        %p343 = pneg %p67
        %p344 = pneg %p64
        %p345 = scmp.lt.s32.totalorder %s36, 1
        %s346 = scalar_select %p345, %s36, 1
        %p347 = scmp.lt.s32.totalorder %s37, 1
        %s348 = scalar_select %p347, %s37, 1
        %s349 = smul.addr %s346, 2
        %s350 = sadd.s32 %s348, %s349
        %s351 = smul.addr %s350, 4
        %s352 = scalar_lea.vmem %s1, %s351
        %p353 = pneg %p95
        %p354 = pneg %p92
        %p355 = pneg %p116
        %p356 = pneg %p113
        %p357 = pneg %p144
        %p358 = pneg %p141
        %s359 = sand.u32 %s131, 1
        %s360 = scalar_lea.sflag [#allocation3], %s359
        %s361 = sand.u32 %s131, 1
        %s362 = smul.addr %s361, 16
        %s363 = scalar_lea.vmem [#allocation2], %s362
        %p364 = pneg %p172
        %p365 = pneg %p169
        %s366 = sand.u32 %s32, 1
        %s367 = scalar_lea.sflag [#allocation5], %s366
        %s368 = sand.u32 %s159, 1
        %s369 = smul.addr %s368, 8
        %s370 = scalar_lea.vmem [#allocation4], %s369
        %p371 = pneg %p200
        %p372 = pneg %p197
        %s373 = sand.u32 %s32, 1
        %s374 = scalar_lea.sflag [#allocation5], %s373
        %s375 = sand.u32 %s187, 1
        %s376 = smul.addr %s375, 8
        %s377 = scalar_lea.vmem [#allocation6], %s376
        %p378 = pneg %p228
        %p379 = pneg %p225
        %s380 = sand.u32 %s32, 1
        %s381 = scalar_lea.sflag [#allocation8], %s380
        %s382 = sand.u32 %s215, 1
        %s383 = scalar_lea.vmem [#allocation7], %s382
        %p384 = pneg %p256
        %p385 = pneg %p253
        %s386 = sand.u32 %s32, 1
        %s387 = scalar_lea.sflag [#allocation8], %s386
        %s388 = sand.u32 %s243, 1
        %s389 = scalar_lea.vmem [#allocation9], %s388
        %p390 = pneg %p284
        %p391 = pneg %p281
        %s392 = sand.u32 %s271, 1
        %s393 = scalar_lea.sflag [#allocation11], %s392
        %s394 = sand.u32 %s271, 1
        %s395 = scalar_lea.vmem [#allocation10], %s394
        %p396 = scmp.lt.s32.totalorder %s36, 1
        %s397 = scalar_select %p396, %s36, 1
        %p398 = scmp.lt.s32.totalorder %s37, 1
        %s399 = scalar_select %p398, %s37, 1
        %s400 = smul.addr %s397, 2
        %s401 = sadd.s32 %s399, %s400
        %s402 = smul.addr %s401, 4
        %s403 = scalar_lea.vmem %s0, %s402
        %p404 = scmp.lt.s32.totalorder %s36, 1
        %s405 = scalar_select %p404, %s36, 1
        %p406 = scmp.lt.s32.totalorder %s37, 1
        %s407 = scalar_select %p406, %s37, 1
        %s408 = smul.addr %s405, 2
        %s409 = sadd.s32 %s407, %s408
        %s410 = smul.addr %s409, 4
        %s411 = scalar_lea.vmem %s1, %s410
        %v412 = vld [vmem:[%s403] sm:$0xf]
        %v413 = vld [vmem:[%s411] sm:$0xf]
        %v414 = vld [vmem:[%s2] sm:$0xff]
        %v415 = vld [vmem:[%s2 + $0x8] sm:$0xff]
        %v416 = vld [vmem:[%s2 + $0x10] sm:$0xff]
        %v417 = vld [vmem:[%s2 + $0x18] sm:$0xff]
        %v418 = vld [vmem:[%s2 + $0x20] sm:$0xff]
        %v419 = vld [vmem:[%s2 + $0x28] sm:$0xff]
        %v420 = vld [vmem:[%s2 + $0x30] sm:$0xff]
        %v421 = vld [vmem:[%s2 + $0x38] sm:$0xff]
        %v422 = vld [vmem:[%s2 + $0x40] sm:$0xff]
        %v423 = vld [vmem:[%s2 + $0x48] sm:$0xff]
        %425 = vset.pattern.permute.xlu0 32
        %426 = vperm.xlu0 %425, %v414
        %v427 = vpop.permute.xlu0 %426
        %430 = vset.pattern.permute.xlu0 32
        %431 = vperm.xlu0 %430, %v415
        %v432 = vpop.permute.xlu0 %431
        %435 = vset.pattern.permute.xlu0 32
        %436 = vperm.xlu0 %435, %v416
        %v437 = vpop.permute.xlu0 %436
        %440 = vset.pattern.permute.xlu0 32
        %441 = vperm.xlu0 %440, %v417
        %v442 = vpop.permute.xlu0 %441
        %vm444 = vcmask 31744
        %v445 = vsel %vm444, %v414, 0
        %v447 = vsel %vm444, %v415, 0
        %v449 = vsel %vm444, %v416, 0
        %v451 = vsel %vm444, %v417, 0
        %vm453 = vcmask 1043456
        %v455 = vsel %vm453, %v412, 0
        %457 = vmatprep.subr.mxu0 0.0
        %458 = vmatpush1.msra.mxu0 %v455
        %459 = vmatprep.subr.mxu0 0.0
        %460 = vmatpush1.msra.mxu0 0.0
        %461 = vmatprep.subr.mxu0 0.0
        %462 = vmatpush1.msra.mxu0 0.0
        %463 = vmatprep.subr.mxu0 0.0
        %464 = vmatpush1.msra.mxu0 0.0
        %465 = vmatprep.subr.mxu0 0.0
        %466 = vmatpush1.msra.mxu0 0.0
        %467 = vmatprep.subr.mxu0 0.0
        %468 = vmatpush1.msra.mxu0 0.0
        %469 = vmatprep.subr.mxu0 0.0
        %470 = vmatpush1.msra.mxu0 0.0
        %471 = vmatprep.subr.mxu0 0.0
        %472 = vmatpush1.msra.mxu0 0.0
        %473 = vmatprep.subr.mxu0 0.0
        %474 = vmatpush1.msra.mxu0 0.0
        %475 = vmatprep.subr.mxu0 0.0
        %476 = vmatpush1.msra.mxu0 0.0
        %477 = vmatprep.subr.mxu0 0.0
        %478 = vmatpush1.msra.mxu0 0.0
        %479 = vmatprep.subr.mxu0 0.0
        %480 = vmatpush1.msra.mxu0 0.0
        %481 = vmatprep.subr.mxu0 0.0
        %482 = vmatpush1.msra.mxu0 0.0
        %483 = vmatprep.subr.mxu0 0.0
        %484 = vmatpush1.msra.mxu0 0.0
        %485 = vmatprep.subr.mxu0 0.0
        %486 = vmatpush1.msra.mxu0 0.0
        %487 = vmatprep.subr.mxu0 0.0
        %488 = vmatpush1.msra.mxu0 0.0
        %489 = vmatprep.subr.mxu0 0.0
        %490 = vmatpush1.msra.mxu0 0.0
        %491 = vmatprep.subr.mxu0 0.0
        %492 = vmatpush1.msra.mxu0 0.0
        %493 = vmatprep.subr.mxu0 0.0
        %494 = vmatpush1.msra.mxu0 0.0
        %495 = vmatprep.subr.mxu0 0.0
        %496 = vmatpush1.msra.mxu0 0.0
        %497 = vmatprep.subr.mxu0 0.0
        %498 = vmatpush1.msra.mxu0 0.0
        %499 = vmatprep.subr.mxu0 0.0
        %500 = vmatpush1.msra.mxu0 0.0
        %501 = vmatprep.subr.mxu0 0.0
        %502 = vmatpush1.msra.mxu0 0.0
        %503 = vmatprep.subr.mxu0 0.0
        %504 = vmatpush1.msra.mxu0 0.0
        %505 = vmatprep.subr.mxu0 0.0
        %506 = vmatpush1.msra.mxu0 0.0
        %507 = vmatprep.subr.mxu0 0.0
        %508 = vmatpush1.msra.mxu0 0.0
        %509 = vmatprep.subr.mxu0 0.0
        %510 = vmatpush1.msra.mxu0 0.0
        %511 = vmatprep.subr.mxu0 0.0
        %512 = vmatpush1.msra.mxu0 0.0
        %513 = vmatprep.subr.mxu0 0.0
        %514 = vmatpush1.msra.mxu0 0.0
        %515 = vmatprep.subr.mxu0 0.0
        %516 = vmatpush1.msra.mxu0 0.0
        %517 = vmatprep.subr.mxu0 0.0
        %518 = vmatpush1.msra.mxu0 0.0
        %519 = vmatprep.subr.mxu0 0.0
        %520 = vmatpush1.msra.mxu0 0.0
        %521 = vmatprep.mubr.f32.mxu0 0.0
        %522 = vmatmul.mubr.f32.gmra.mrb[0].mxu0 %v445
        %v523 = vpop.f32.mrb[0].mxu0
        %v524 = vadd.f32 %v427, %v523
        %v525 = vpop.f32.mrb[0].mxu0
        %526 = vmatprep.mubr.f32.mxu0 0.0
        %527 = vmatmul.mubr.f32.gmra.mrb[0].mxu0 %v447
        %v528 = vpop.f32.mrb[0].mxu0
        %v529 = vadd.f32 %v432, %v528
        %v530 = vpop.f32.mrb[0].mxu0
        %531 = vmatprep.mubr.f32.mxu0 0.0
        %532 = vmatmul.mubr.f32.gmra.mrb[0].mxu0 %v449
        %v533 = vpop.f32.mrb[0].mxu0
        %v534 = vadd.f32 %v437, %v533
        %v535 = vpop.f32.mrb[0].mxu0
        %536 = vmatprep.mubr.f32.mxu0 0.0
        %537 = vmatmul.mubr.f32.gmra.mrb[0].mxu0 %v451
        %v538 = vpop.f32.mrb[0].mxu0
        %v539 = vadd.f32 %v442, %v538
        %v540 = vpop.f32.mrb[0].mxu0
        %541 = vdwg.mxu0
        %v542 = vmax.f32 %v524, 0.0
        %v543 = vmax.f32 %v529, 0.0
        %v544 = vmax.f32 %v534, 0.0
        %v545 = vmax.f32 %v539, 0.0
        %v547 = vsel %vm453, %v413, 0
        %549 = vmatprep.subr.mxu0 0.0
        %550 = vmatpush1.msra.mxu0 %v547
        %551 = vmatprep.subr.mxu0 0.0
        %552 = vmatpush1.msra.mxu0 0.0
        %553 = vmatprep.subr.mxu0 0.0
        %554 = vmatpush1.msra.mxu0 0.0
        %555 = vmatprep.subr.mxu0 0.0
        %556 = vmatpush1.msra.mxu0 0.0
        %557 = vmatprep.subr.mxu0 0.0
        %558 = vmatpush1.msra.mxu0 0.0
        %559 = vmatprep.subr.mxu0 0.0
        %560 = vmatpush1.msra.mxu0 0.0
        %561 = vmatprep.subr.mxu0 0.0
        %562 = vmatpush1.msra.mxu0 0.0
        %563 = vmatprep.subr.mxu0 0.0
        %564 = vmatpush1.msra.mxu0 0.0
        %565 = vmatprep.subr.mxu0 0.0
        %566 = vmatpush1.msra.mxu0 0.0
        %567 = vmatprep.subr.mxu0 0.0
        %568 = vmatpush1.msra.mxu0 0.0
        %569 = vmatprep.subr.mxu0 0.0
        %570 = vmatpush1.msra.mxu0 0.0
        %571 = vmatprep.subr.mxu0 0.0
        %572 = vmatpush1.msra.mxu0 0.0
        %573 = vmatprep.subr.mxu0 0.0
        %574 = vmatpush1.msra.mxu0 0.0
        %575 = vmatprep.subr.mxu0 0.0
        %576 = vmatpush1.msra.mxu0 0.0
        %577 = vmatprep.subr.mxu0 0.0
        %578 = vmatpush1.msra.mxu0 0.0
        %579 = vmatprep.subr.mxu0 0.0
        %580 = vmatpush1.msra.mxu0 0.0
        %581 = vmatprep.subr.mxu0 0.0
        %582 = vmatpush1.msra.mxu0 0.0
        %583 = vmatprep.subr.mxu0 0.0
        %584 = vmatpush1.msra.mxu0 0.0
        %585 = vmatprep.subr.mxu0 0.0
        %586 = vmatpush1.msra.mxu0 0.0
        %587 = vmatprep.subr.mxu0 0.0
        %588 = vmatpush1.msra.mxu0 0.0
        %589 = vmatprep.subr.mxu0 0.0
        %590 = vmatpush1.msra.mxu0 0.0
        %591 = vmatprep.subr.mxu0 0.0
        %592 = vmatpush1.msra.mxu0 0.0
        %593 = vmatprep.subr.mxu0 0.0
        %594 = vmatpush1.msra.mxu0 0.0
        %595 = vmatprep.subr.mxu0 0.0
        %596 = vmatpush1.msra.mxu0 0.0
        %597 = vmatprep.subr.mxu0 0.0
        %598 = vmatpush1.msra.mxu0 0.0
        %599 = vmatprep.subr.mxu0 0.0
        %600 = vmatpush1.msra.mxu0 0.0
        %601 = vmatprep.subr.mxu0 0.0
        %602 = vmatpush1.msra.mxu0 0.0
        %603 = vmatprep.subr.mxu0 0.0
        %604 = vmatpush1.msra.mxu0 0.0
        %605 = vmatprep.subr.mxu0 0.0
        %606 = vmatpush1.msra.mxu0 0.0
        %607 = vmatprep.subr.mxu0 0.0
        %608 = vmatpush1.msra.mxu0 0.0
        %609 = vmatprep.subr.mxu0 0.0
        %610 = vmatpush1.msra.mxu0 0.0
        %611 = vmatprep.subr.mxu0 0.0
        %612 = vmatpush1.msra.mxu0 0.0
        %613 = vmatprep.mubr.f32.mxu0 0.0
        %614 = vmatmul.mubr.f32.gmra.mrb[0].mxu0 %v445
        %v615 = vpop.f32.mrb[0].mxu0
        %v616 = vadd.f32 %v427, %v615
        %v617 = vpop.f32.mrb[0].mxu0
        %618 = vmatprep.mubr.f32.mxu0 0.0
        %619 = vmatmul.mubr.f32.gmra.mrb[0].mxu0 %v447
        %v620 = vpop.f32.mrb[0].mxu0
        %v621 = vadd.f32 %v432, %v620
        %v622 = vpop.f32.mrb[0].mxu0
        %623 = vmatprep.mubr.f32.mxu0 0.0
        %624 = vmatmul.mubr.f32.gmra.mrb[0].mxu0 %v449
        %v625 = vpop.f32.mrb[0].mxu0
        %v626 = vadd.f32 %v437, %v625
        %v627 = vpop.f32.mrb[0].mxu0
        %628 = vmatprep.mubr.f32.mxu0 0.0
        %629 = vmatmul.mubr.f32.gmra.mrb[0].mxu0 %v451
        %v630 = vpop.f32.mrb[0].mxu0
        %v631 = vadd.f32 %v442, %v630
        %v632 = vpop.f32.mrb[0].mxu0
        %633 = vdwg.mxu0
        %v634 = vmax.f32 %v616, 0.0
        %v635 = vmax.f32 %v621, 0.0
        %v636 = vmax.f32 %v626, 0.0
        %v637 = vmax.f32 %v631, 0.0
        %639 = vset.pattern.permute.xlu0 32
        %640 = vperm.xlu0 %639, %v418
        %v641 = vpop.permute.xlu0 %640
        %644 = vset.pattern.permute.xlu0 32
        %645 = vperm.xlu0 %644, %v419
        %v646 = vpop.permute.xlu0 %645
        %649 = vset.pattern.permute.xlu0 32
        %650 = vperm.xlu0 %649, %v420
        %v651 = vpop.permute.xlu0 %650
        %654 = vset.pattern.permute.xlu0 32
        %655 = vperm.xlu0 %654, %v421
        %v656 = vpop.permute.xlu0 %655
        %vm658 = vcmask 261120
        %v659 = vsel %vm658, %v418, 0
        %v661 = vsel %vm658, %v419, 0
        %v663 = vsel %vm658, %v420, 0
        %v665 = vsel %vm658, %v421, 0
        %667 = vmatprep.subr.mxu0 0.0
        %668 = vmatpush1.msra.mxu0 %v542
        %669 = vmatprep.subr.mxu0 0.0
        %670 = vmatpush1.msra.mxu0 %v543
        %671 = vmatprep.subr.mxu0 0.0
        %672 = vmatpush1.msra.mxu0 %v544
        %673 = vmatprep.subr.mxu0 0.0
        %674 = vmatpush1.msra.mxu0 %v545
        %675 = vmatprep.subr.mxu0 0.0
        %676 = vmatpush1.msra.mxu0 0.0
        %677 = vmatprep.subr.mxu0 0.0
        %678 = vmatpush1.msra.mxu0 0.0
        %679 = vmatprep.subr.mxu0 0.0
        %680 = vmatpush1.msra.mxu0 0.0
        %681 = vmatprep.subr.mxu0 0.0
        %682 = vmatpush1.msra.mxu0 0.0
        %683 = vmatprep.subr.mxu0 0.0
        %684 = vmatpush1.msra.mxu0 0.0
        %685 = vmatprep.subr.mxu0 0.0
        %686 = vmatpush1.msra.mxu0 0.0
        %687 = vmatprep.subr.mxu0 0.0
        %688 = vmatpush1.msra.mxu0 0.0
        %689 = vmatprep.subr.mxu0 0.0
        %690 = vmatpush1.msra.mxu0 0.0
        %691 = vmatprep.subr.mxu0 0.0
        %692 = vmatpush1.msra.mxu0 0.0
        %693 = vmatprep.subr.mxu0 0.0
        %694 = vmatpush1.msra.mxu0 0.0
        %695 = vmatprep.subr.mxu0 0.0
        %696 = vmatpush1.msra.mxu0 0.0
        %697 = vmatprep.subr.mxu0 0.0
        %698 = vmatpush1.msra.mxu0 0.0
        %699 = vmatprep.subr.mxu0 0.0
        %700 = vmatpush1.msra.mxu0 0.0
        %701 = vmatprep.subr.mxu0 0.0
        %702 = vmatpush1.msra.mxu0 0.0
        %703 = vmatprep.subr.mxu0 0.0
        %704 = vmatpush1.msra.mxu0 0.0
        %705 = vmatprep.subr.mxu0 0.0
        %706 = vmatpush1.msra.mxu0 0.0
        %707 = vmatprep.subr.mxu0 0.0
        %708 = vmatpush1.msra.mxu0 0.0
        %709 = vmatprep.subr.mxu0 0.0
        %710 = vmatpush1.msra.mxu0 0.0
        %711 = vmatprep.subr.mxu0 0.0
        %712 = vmatpush1.msra.mxu0 0.0
        %713 = vmatprep.subr.mxu0 0.0
        %714 = vmatpush1.msra.mxu0 0.0
        %715 = vmatprep.subr.mxu0 0.0
        %716 = vmatpush1.msra.mxu0 0.0
        %717 = vmatprep.subr.mxu0 0.0
        %718 = vmatpush1.msra.mxu0 0.0
        %719 = vmatprep.subr.mxu0 0.0
        %720 = vmatpush1.msra.mxu0 0.0
        %721 = vmatprep.subr.mxu0 0.0
        %722 = vmatpush1.msra.mxu0 0.0
        %723 = vmatprep.subr.mxu0 0.0
        %724 = vmatpush1.msra.mxu0 0.0
        %725 = vmatprep.subr.mxu0 0.0
        %726 = vmatpush1.msra.mxu0 0.0
        %727 = vmatprep.subr.mxu0 0.0
        %728 = vmatpush1.msra.mxu0 0.0
        %729 = vmatprep.subr.mxu0 0.0
        %730 = vmatpush1.msra.mxu0 0.0
        %731 = vmatprep.mubr.f32.mxu0 0.0
        %732 = vmatmul.mubr.f32.gmra.mrb[0].mxu0 %v659
        %v733 = vpop.f32.mrb[0].mxu0
        %v734 = vadd.f32 %v641, %v733
        %v735 = vpop.f32.mrb[0].mxu0
        %736 = vmatprep.mubr.f32.mxu0 0.0
        %737 = vmatmul.mubr.f32.gmra.mrb[0].mxu0 %v661
        %v738 = vpop.f32.mrb[0].mxu0
        %v739 = vadd.f32 %v646, %v738
        %v740 = vpop.f32.mrb[0].mxu0
        %741 = vmatprep.mubr.f32.mxu0 0.0
        %742 = vmatmul.mubr.f32.gmra.mrb[0].mxu0 %v663
        %v743 = vpop.f32.mrb[0].mxu0
        %v744 = vadd.f32 %v651, %v743
        %v745 = vpop.f32.mrb[0].mxu0
        %746 = vmatprep.mubr.f32.mxu0 0.0
        %747 = vmatmul.mubr.f32.gmra.mrb[0].mxu0 %v665
        %v748 = vpop.f32.mrb[0].mxu0
        %v749 = vadd.f32 %v656, %v748
        %v750 = vpop.f32.mrb[0].mxu0
        %751 = vdwg.mxu0
        %753 = vset.pattern.permute.xlu0 32
        %754 = vperm.xlu0 %753, %v422
        %v755 = vpop.permute.xlu0 %754
        %758 = vset.pattern.permute.xlu0 32
        %759 = vperm.xlu0 %758, %v423
        %v760 = vpop.permute.xlu0 %759
        %v762 = vsel %vm658, %v422, 0
        %v764 = vsel %vm658, %v423, 0
        %766 = vmatprep.subr.mxu0 0.0
        %767 = vmatpush1.msra.mxu0 %v634
        %768 = vmatprep.subr.mxu0 0.0
        %769 = vmatpush1.msra.mxu0 %v635
        %770 = vmatprep.subr.mxu0 0.0
        %771 = vmatpush1.msra.mxu0 %v636
        %772 = vmatprep.subr.mxu0 0.0
        %773 = vmatpush1.msra.mxu0 %v637
        %774 = vmatprep.subr.mxu0 0.0
        %775 = vmatpush1.msra.mxu0 0.0
        %776 = vmatprep.subr.mxu0 0.0
        %777 = vmatpush1.msra.mxu0 0.0
        %778 = vmatprep.subr.mxu0 0.0
        %779 = vmatpush1.msra.mxu0 0.0
        %780 = vmatprep.subr.mxu0 0.0
        %781 = vmatpush1.msra.mxu0 0.0
        %782 = vmatprep.subr.mxu0 0.0
        %783 = vmatpush1.msra.mxu0 0.0
        %784 = vmatprep.subr.mxu0 0.0
        %785 = vmatpush1.msra.mxu0 0.0
        %786 = vmatprep.subr.mxu0 0.0
        %787 = vmatpush1.msra.mxu0 0.0
        %788 = vmatprep.subr.mxu0 0.0
        %789 = vmatpush1.msra.mxu0 0.0
        %790 = vmatprep.subr.mxu0 0.0
        %791 = vmatpush1.msra.mxu0 0.0
        %792 = vmatprep.subr.mxu0 0.0
        %793 = vmatpush1.msra.mxu0 0.0
        %794 = vmatprep.subr.mxu0 0.0
        %795 = vmatpush1.msra.mxu0 0.0
        %796 = vmatprep.subr.mxu0 0.0
        %797 = vmatpush1.msra.mxu0 0.0
        %798 = vmatprep.subr.mxu0 0.0
        %799 = vmatpush1.msra.mxu0 0.0
        %800 = vmatprep.subr.mxu0 0.0
        %801 = vmatpush1.msra.mxu0 0.0
        %802 = vmatprep.subr.mxu0 0.0
        %803 = vmatpush1.msra.mxu0 0.0
        %804 = vmatprep.subr.mxu0 0.0
        %805 = vmatpush1.msra.mxu0 0.0
        %806 = vmatprep.subr.mxu0 0.0
        %807 = vmatpush1.msra.mxu0 0.0
        %808 = vmatprep.subr.mxu0 0.0
        %809 = vmatpush1.msra.mxu0 0.0
        %810 = vmatprep.subr.mxu0 0.0
        %811 = vmatpush1.msra.mxu0 0.0
        %812 = vmatprep.subr.mxu0 0.0
        %813 = vmatpush1.msra.mxu0 0.0
        %814 = vmatprep.subr.mxu0 0.0
        %815 = vmatpush1.msra.mxu0 0.0
        %816 = vmatprep.subr.mxu0 0.0
        %817 = vmatpush1.msra.mxu0 0.0
        %818 = vmatprep.subr.mxu0 0.0
        %819 = vmatpush1.msra.mxu0 0.0
        %820 = vmatprep.subr.mxu0 0.0
        %821 = vmatpush1.msra.mxu0 0.0
        %822 = vmatprep.subr.mxu0 0.0
        %823 = vmatpush1.msra.mxu0 0.0
        %824 = vmatprep.subr.mxu0 0.0
        %825 = vmatpush1.msra.mxu0 0.0
        %826 = vmatprep.subr.mxu0 0.0
        %827 = vmatpush1.msra.mxu0 0.0
        %828 = vmatprep.subr.mxu0 0.0
        %829 = vmatpush1.msra.mxu0 0.0
        %830 = vmatprep.mubr.f32.mxu0 0.0
        %831 = vmatmul.mubr.f32.gmra.mrb[0].mxu0 %v762
        %v832 = vpop.f32.mrb[0].mxu0
        %v833 = vadd.f32 %v755, %v832
        %v834 = vpop.f32.mrb[0].mxu0
        %835 = vmatprep.mubr.f32.mxu0 0.0
        %836 = vmatmul.mubr.f32.gmra.mrb[0].mxu0 %v764
        %v837 = vpop.f32.mrb[0].mxu0
        %v838 = vadd.f32 %v760, %v837
        %v839 = vpop.f32.mrb[0].mxu0
        %840 = vdwg.mxu0
        %841 = vst [vmem:[%s363] sm:$0xff] %v734
        %842 = vst [vmem:[%s363 + $0x8] sm:$0xff] %v739
        %843 = vst [vmem:[%s370] sm:$0xff] %v744
        %844 = vst [vmem:[%s383] sm:$0x1] %v749
        %845 = vst [vmem:[%s377] sm:$0xff] %v833
        %846 = vst [vmem:[%s389] sm:$0x1] %v838
        %v847 = vmul.f32 %v542, %v634
        %v848 = vmul.f32 %v543, %v635
        %v849 = vmul.f32 %v544, %v636
        %v850 = vmul.f32 %v545, %v637
        %v851 = vadd.f32 %v847, %v848
        %v852 = vadd.f32 %v851, %v849
        %v853 = vadd.f32 %v852, %v850
        %v854 = vrot.slane %v853, 4
        %v855 = vadd.f32 %v853, %v854
        %v856 = vrot.slane %v855, 2
        %v857 = vadd.f32 %v855, %v856
        %v858 = vrot.slane %v857, 1
        %v859 = vadd.f32 %v857, %v858
        %860 = vrot.lane.b32.xlu0 %v634, 1
        %v861 = vpop.permute.xlu0 %860
        %862 = vrot.lane.b32.xlu0 %v635, 1
        %v863 = vpop.permute.xlu0 %862
        %864 = vrot.lane.b32.xlu0 %v636, 1
        %v865 = vpop.permute.xlu0 %864
        %866 = vrot.lane.b32.xlu0 %v637, 1
        %v867 = vpop.permute.xlu0 %866
        %v868 = vmul.f32 %v542, %v861
        %v869 = vmul.f32 %v543, %v863
        %v870 = vmul.f32 %v544, %v865
        %v871 = vmul.f32 %v545, %v867
        %v872 = vadd.f32 %v868, %v869
        %v873 = vadd.f32 %v872, %v870
        %v874 = vadd.f32 %v873, %v871
        %v875 = vrot.slane %v874, 4
        %v876 = vadd.f32 %v874, %v875
        %v877 = vrot.slane %v876, 2
        %v878 = vadd.f32 %v876, %v877
        %v879 = vrot.slane %v878, 1
        %v880 = vadd.f32 %v878, %v879
        %881 = vrot.lane.b32.xlu0 %v634, 2
        %v882 = vpop.permute.xlu0 %881
        %883 = vrot.lane.b32.xlu0 %v635, 2
        %v884 = vpop.permute.xlu0 %883
        %885 = vrot.lane.b32.xlu0 %v636, 2
        %v886 = vpop.permute.xlu0 %885
        %887 = vrot.lane.b32.xlu0 %v637, 2
        %v888 = vpop.permute.xlu0 %887
        %v889 = vmul.f32 %v542, %v882
        %v890 = vmul.f32 %v543, %v884
        %v891 = vmul.f32 %v544, %v886
        %v892 = vmul.f32 %v545, %v888
        %v893 = vadd.f32 %v889, %v890
        %v894 = vadd.f32 %v893, %v891
        %v895 = vadd.f32 %v894, %v892
        %v896 = vrot.slane %v895, 4
        %v897 = vadd.f32 %v895, %v896
        %v898 = vrot.slane %v897, 2
        %v899 = vadd.f32 %v897, %v898
        %v900 = vrot.slane %v899, 1
        %v901 = vadd.f32 %v899, %v900
        %902 = vrot.lane.b32.xlu0 %v634, 3
        %v903 = vpop.permute.xlu0 %902
        %904 = vrot.lane.b32.xlu0 %v635, 3
        %v905 = vpop.permute.xlu0 %904
        %906 = vrot.lane.b32.xlu0 %v636, 3
        %v907 = vpop.permute.xlu0 %906
        %908 = vrot.lane.b32.xlu0 %v637, 3
        %v909 = vpop.permute.xlu0 %908
        %v910 = vmul.f32 %v542, %v903
        %v911 = vmul.f32 %v543, %v905
        %v912 = vmul.f32 %v544, %v907
        %v913 = vmul.f32 %v545, %v909
        %v914 = vadd.f32 %v910, %v911
        %v915 = vadd.f32 %v914, %v912
        %v916 = vadd.f32 %v915, %v913
        %v917 = vrot.slane %v916, 4
        %v918 = vadd.f32 %v916, %v917
        %v919 = vrot.slane %v918, 2
        %v920 = vadd.f32 %v918, %v919
        %v921 = vrot.slane %v920, 1
        %v922 = vadd.f32 %v920, %v921
        %923 = vrot.lane.b32.xlu0 %v634, 4
        %v924 = vpop.permute.xlu0 %923
        %925 = vrot.lane.b32.xlu0 %v635, 4
        %v926 = vpop.permute.xlu0 %925
        %927 = vrot.lane.b32.xlu0 %v636, 4
        %v928 = vpop.permute.xlu0 %927
        %929 = vrot.lane.b32.xlu0 %v637, 4
        %v930 = vpop.permute.xlu0 %929
        %v931 = vmul.f32 %v542, %v924
        %v932 = vmul.f32 %v543, %v926
        %v933 = vmul.f32 %v544, %v928
        %v934 = vmul.f32 %v545, %v930
        %v935 = vadd.f32 %v931, %v932
        %v936 = vadd.f32 %v935, %v933
        %v937 = vadd.f32 %v936, %v934
        %v938 = vrot.slane %v937, 4
        %v939 = vadd.f32 %v937, %v938
        %v940 = vrot.slane %v939, 2
        %v941 = vadd.f32 %v939, %v940
        %v942 = vrot.slane %v941, 1
        %v943 = vadd.f32 %v941, %v942
        %944 = vrot.lane.b32.xlu0 %v634, 5
        %v945 = vpop.permute.xlu0 %944
        %946 = vrot.lane.b32.xlu0 %v635, 5
        %v947 = vpop.permute.xlu0 %946
        %948 = vrot.lane.b32.xlu0 %v636, 5
        %v949 = vpop.permute.xlu0 %948
        %950 = vrot.lane.b32.xlu0 %v637, 5
        %v951 = vpop.permute.xlu0 %950
        %v952 = vmul.f32 %v542, %v945
        %v953 = vmul.f32 %v543, %v947
        %v954 = vmul.f32 %v544, %v949
        %v955 = vmul.f32 %v545, %v951
        %v956 = vadd.f32 %v952, %v953
        %v957 = vadd.f32 %v956, %v954
        %v958 = vadd.f32 %v957, %v955
        %v959 = vrot.slane %v958, 4
        %v960 = vadd.f32 %v958, %v959
        %v961 = vrot.slane %v960, 2
        %v962 = vadd.f32 %v960, %v961
        %v963 = vrot.slane %v962, 1
        %v964 = vadd.f32 %v962, %v963
        %965 = vrot.lane.b32.xlu0 %v634, 6
        %v966 = vpop.permute.xlu0 %965
        %967 = vrot.lane.b32.xlu0 %v635, 6
        %v968 = vpop.permute.xlu0 %967
        %969 = vrot.lane.b32.xlu0 %v636, 6
        %v970 = vpop.permute.xlu0 %969
        %971 = vrot.lane.b32.xlu0 %v637, 6
        %v972 = vpop.permute.xlu0 %971
        %v973 = vmul.f32 %v542, %v966
        %v974 = vmul.f32 %v543, %v968
        %v975 = vmul.f32 %v544, %v970
        %v976 = vmul.f32 %v545, %v972
        %v977 = vadd.f32 %v973, %v974
        %v978 = vadd.f32 %v977, %v975
        %v979 = vadd.f32 %v978, %v976
        %v980 = vrot.slane %v979, 4
        %v981 = vadd.f32 %v979, %v980
        %v982 = vrot.slane %v981, 2
        %v983 = vadd.f32 %v981, %v982
        %v984 = vrot.slane %v983, 1
        %v985 = vadd.f32 %v983, %v984
        %986 = vrot.lane.b32.xlu0 %v634, 7
        %v987 = vpop.permute.xlu0 %986
        %988 = vrot.lane.b32.xlu0 %v635, 7
        %v989 = vpop.permute.xlu0 %988
        %990 = vrot.lane.b32.xlu0 %v636, 7
        %v991 = vpop.permute.xlu0 %990
        %992 = vrot.lane.b32.xlu0 %v637, 7
        %v993 = vpop.permute.xlu0 %992
        %v994 = vmul.f32 %v542, %v987
        %v995 = vmul.f32 %v543, %v989
        %v996 = vmul.f32 %v544, %v991
        %v997 = vmul.f32 %v545, %v993
        %v998 = vadd.f32 %v994, %v995
        %v999 = vadd.f32 %v998, %v996
        %v1000 = vadd.f32 %v999, %v997
        %v1001 = vrot.slane %v1000, 4
        %v1002 = vadd.f32 %v1000, %v1001
        %v1003 = vrot.slane %v1002, 2
        %v1004 = vadd.f32 %v1002, %v1003
        %v1005 = vrot.slane %v1004, 1
        %v1006 = vadd.f32 %v1004, %v1005
        %vm1007 = vcmask 1040384
        %v1008 = vsel %vm1007, %v859, %v880
        %vm1009 = vcmask 1041408
        %v1010 = vsel %vm1009, %v1008, %v901
        %vm1011 = vcmask 1042432
        %v1012 = vsel %vm1011, %v1010, %v922
        %v1013 = vsel %vm453, %v1012, %v943
        %vm1014 = vcmask 1044480
        %v1015 = vsel %vm1014, %v1013, %v964
        %vm1016 = vcmask 1045504
        %v1017 = vsel %vm1016, %v1015, %v985
        %vm1018 = vcmask 1046528
        %v1019 = vsel %vm1018, %v1017, %v1006
        %v1020 = vlaneseq
        %v1021 = vand.u32 %v1020, 127
        %vm1022 = vcmp.lt.s32.totalorder %v1021, 0
        %v1023 = vsub.s32 0, %v1021
        %v1024 = vsel %vm1022, %v1023, %v1021
        %v1025 = vshrl.u32 %v1024, 4
        %v1026 = vand.u32 %v1024, 15
        %v1027 = vsub.s32 0, %v1026
        %v1028 = vsel %vm1022, %v1027, %v1026
        %vm1029 = vcmp.ne.s32.totalorder %v1028, 0
        %vm1030 = vcmp.lt.s32.totalorder %v1028, 0
        %vm1031 = vmand %vm1030, %vm1029
        %v1032 = vadd.s32 %v1028, 16
        %v1033 = vsel %vm1031, %v1032, %v1028
        %v1034 = vlaneseq
        %v1035 = vshrl.u32 %v1034, 7
        %vm1036 = vcmp.ge.s32.totalorder %v1033, %v1035
        %v1037 = vsel %vm1036, %v1019, -1e+30
        %v1038 = vrot.slane %v1037, 4
        %v1039 = vmax.f32 %v1037, %v1038
        %v1040 = vrot.slane %v1039, 2
        %v1041 = vmax.f32 %v1039, %v1040
        %v1042 = vrot.slane %v1041, 1
        %v1043 = vmax.f32 %v1041, %v1042
        %v1044 = vsub.f32 %v1037, %v1043
        %v1045 = vmul.f32 %v1044, 0.17677669
        %v1046 = vmul.f32 %v1045, 1.442695
        %v1047 = vpow.pop %v1046
        %v1048 = vrot.slane %v1047, 4
        %v1049 = vadd.f32 %v1047, %v1048
        %v1050 = vrot.slane %v1049, 2
        %v1051 = vadd.f32 %v1049, %v1050
        %v1052 = vrot.slane %v1051, 1
        %v1053 = vadd.f32 %v1051, %v1052
        %v1054 = vcvt.s32.f32 %v1035
        %v1055 = vmul.f32 %v1047, %v1054
        %v1056 = vrot.slane %v1055, 4
        %v1057 = vadd.f32 %v1055, %v1056
        %v1058 = vrot.slane %v1057, 2
        %v1059 = vadd.f32 %v1057, %v1058
        %v1060 = vrot.slane %v1059, 1
        %v1061 = vadd.f32 %v1059, %v1060
        %v1062 = vrcp.pop %v1053
        %v1063 = vmul.f32 %v1061, %v1062
        %1064 = vst [vmem:[%s395] sm:$0x1] %v1063
        %s1065 = sand.u32 %s131, 1
        %s1066 = scalar_lea.sflag [#allocation3], %s1065
        %s1067 = sand.u32 %s131, 1
        %s1068 = smul.addr %s1067, 16
        %s1069 = scalar_lea.vmem [#allocation2], %s1068
        %s1070 = sand.u32 %s32, 1
        %s1071 = scalar_lea.sflag [#allocation5], %s1070
        %s1072 = sand.u32 %s159, 1
        %s1073 = smul.addr %s1072, 8
        %s1074 = scalar_lea.vmem [#allocation4], %s1073
        %s1075 = sand.u32 %s32, 1
        %s1076 = scalar_lea.sflag [#allocation5], %s1075
        %s1077 = sand.u32 %s187, 1
        %s1078 = smul.addr %s1077, 8
        %s1079 = scalar_lea.vmem [#allocation6], %s1078
        %s1080 = sand.u32 %s32, 1
        %s1081 = scalar_lea.sflag [#allocation8], %s1080
        %s1082 = sand.u32 %s215, 1
        %s1083 = scalar_lea.vmem [#allocation7], %s1082
        %s1084 = sand.u32 %s32, 1
        %s1085 = scalar_lea.sflag [#allocation8], %s1084
        %s1086 = sand.u32 %s243, 1
        %s1087 = scalar_lea.vmem [#allocation9], %s1086
        %s1088 = sand.u32 %s271, 1
        %s1089 = scalar_lea.sflag [#allocation11], %s1088
        %s1090 = sand.u32 %s271, 1
        %s1091 = scalar_lea.vmem [#allocation10], %s1090
        // Predicated region
        $region33: #{tpu_custom_call.1} parent=31 // pred_check
          %p1092 = pneg %p141
        $region34: #{tpu_custom_call.1} parent=31 // pred_check_branch
          %1094 = sbr.rel (%p1092) target = $region36
        $region35: #{tpu_custom_call.1} parent=31 // pred_region
          %s1096 = ssub.s32 256, 256
          %1097 = vsyncadd %s1066, %s1096
          %s1098 = smul.addr %s36, 4
          %s1099 = sadd.s32 %s37, %s1098
          %s1100 = smul.addr %s1099, 128
          %s1101 = scalar_lea.hbm %s3, %s1100
          %s1102 = sshll.u32 %s1069, 4
          %s1103 = int_to_ptr.vmem [resolvable:$true] %s1102
          %1108 = dma.vmem_to_hbm [thread:$0]  %s1103, 256, %s1101, %s1066, 128, 256, 8
        $region36: #{tpu_custom_call.1} parent=31 // pred_fallthru
          _
        // Predicated region
        $region37: #{tpu_custom_call.1} parent=31 // pred_check
          %p1109 = pneg %p169
        $region38: #{tpu_custom_call.1} parent=31 // pred_check_branch
          %1111 = sbr.rel (%p1109) target = $region40
        $region39: #{tpu_custom_call.1} parent=31 // pred_region
          %s1113 = ssub.s32 128, 128
          %1114 = vsyncadd %s1071, %s1113
          %s1115 = smul.addr %s36, 2
          %s1116 = sadd.s32 %s37, %s1115
          %s1117 = smul.addr %s1116, 128
          %s1118 = scalar_lea.hbm %s4, %s1117
          %s1120 = sshll.u32 %s1074, 4
          %s1121 = int_to_ptr.vmem [resolvable:$true] %s1120
          %1123 = dma.vmem_to_hbm [thread:$0]  %s1121, 128, %s1118, %s1071
        $region40: #{tpu_custom_call.1} parent=31 // pred_fallthru
          _
        // Predicated region
        $region41: #{tpu_custom_call.1} parent=31 // pred_check
          %p1124 = pneg %p197
        $region42: #{tpu_custom_call.1} parent=31 // pred_check_branch
          %1126 = sbr.rel (%p1124) target = $region44
        $region43: #{tpu_custom_call.1} parent=31 // pred_region
          %s1128 = ssub.s32 128, 128
          %1129 = vsyncadd %s1076, %s1128
          %s1130 = smul.addr %s36, 2
          %s1131 = sadd.s32 %s37, %s1130
          %s1132 = smul.addr %s1131, 128
          %s1133 = scalar_lea.hbm %s5, %s1132
          %s1135 = sshll.u32 %s1079, 4
          %s1136 = int_to_ptr.vmem [resolvable:$true] %s1135
          %1138 = dma.vmem_to_hbm [thread:$0]  %s1136, 128, %s1133, %s1076
        $region44: #{tpu_custom_call.1} parent=31 // pred_fallthru
          _
        // Predicated region
        $region45: #{tpu_custom_call.1} parent=31 // pred_check
          %p1139 = pneg %p225
        $region46: #{tpu_custom_call.1} parent=31 // pred_check_branch
          %1141 = sbr.rel (%p1139) target = $region48
        $region47: #{tpu_custom_call.1} parent=31 // pred_region
          %s1143 = ssub.s32 16, 16
          %1144 = vsyncadd %s1081, %s1143
          %s1145 = smul.addr %s36, 2
          %s1146 = sadd.s32 %s37, %s1145
          %s1147 = smul.addr %s1146, 16
          %s1148 = scalar_lea.hbm %s6, %s1147
          %s1150 = sshll.u32 %s1083, 4
          %s1151 = int_to_ptr.vmem [resolvable:$true] %s1150
          %1153 = dma.vmem_to_hbm [thread:$0]  %s1151, 16, %s1148, %s1081
        $region48: #{tpu_custom_call.1} parent=31 // pred_fallthru
          _
        // Predicated region
        $region49: #{tpu_custom_call.1} parent=31 // pred_check
          %p1154 = pneg %p253
        $region50: #{tpu_custom_call.1} parent=31 // pred_check_branch
          %1156 = sbr.rel (%p1154) target = $region52
        $region51: #{tpu_custom_call.1} parent=31 // pred_region
          %s1158 = ssub.s32 16, 16
          %1159 = vsyncadd %s1085, %s1158
          %s1160 = smul.addr %s36, 2
          %s1161 = sadd.s32 %s37, %s1160
          %s1162 = smul.addr %s1161, 16
          %s1163 = scalar_lea.hbm %s7, %s1162
          %s1165 = sshll.u32 %s1087, 4
          %s1166 = int_to_ptr.vmem [resolvable:$true] %s1165
          %1168 = dma.vmem_to_hbm [thread:$0]  %s1166, 16, %s1163, %s1085
        $region52: #{tpu_custom_call.1} parent=31 // pred_fallthru
          _
        // Predicated region
        $region53: #{tpu_custom_call.1} parent=31 // pred_check
          %p1169 = pneg %p281
        $region54: #{tpu_custom_call.1} parent=31 // pred_check_branch
          %1171 = sbr.rel (%p1169) target = $region56
        $region55: #{tpu_custom_call.1} parent=31 // pred_region
          %s1173 = ssub.s32 16, 16
          %1174 = vsyncadd %s1089, %s1173
          %s1175 = smul.addr %s36, 2
          %s1176 = sadd.s32 %s37, %s1175
          %s1177 = smul.addr %s1176, 16
          %s1178 = scalar_lea.hbm %s8, %s1177
          %s1180 = sshll.u32 %s1091, 4
          %s1181 = int_to_ptr.vmem [resolvable:$true] %s1180
          %1183 = dma.vmem_to_hbm [thread:$0]  %s1181, 16, %s1178, %s1089
        $region56: #{tpu_custom_call.1} parent=31 // pred_fallthru
          _
      $region32: #{tpu_custom_call.1} parent=5 // pred_fallthru
        _
      %p1184 = scmp.le.s32.totalorder 2, %s27
      // Predicated region
      $region57: #{tpu_custom_call.1} parent=5 // pred_check
        %p1185 = pneg %p1184
      $region58: #{tpu_custom_call.1} parent=5 // pred_check_branch
        %1187 = sbr.rel (%p1185) target = $region60
      $region59: #{tpu_custom_call.1} parent=5 // pred_region
        %s1188 = ssub.s32 %s27, 2
        // Predicated region
        $region61: #{tpu_custom_call.1} parent=59 // pred_check
          %p1189 = pneg %p147
        $region62: #{tpu_custom_call.1} parent=59 // pred_check_branch
          %1191 = sbr.rel (%p1189) target = $region64
        $region63: #{tpu_custom_call.1} parent=59 // pred_region
          %s1192 = sand.u32 %s132, 1
          %s1193 = scalar_lea.sflag [#allocation3], %s1192
          %s1194 = sand.u32 %s132, 1
          %s1195 = smul.addr %s1194, 16
          %s1196 = scalar_lea.vmem [#allocation2], %s1195
          %1197 = dma.done %s1193, 256
        $region64: #{tpu_custom_call.1} parent=59 // pred_fallthru
          _
        // Predicated region
        $region65: #{tpu_custom_call.1} parent=59 // pred_check
          %p1198 = pneg %p175
        $region66: #{tpu_custom_call.1} parent=59 // pred_check_branch
          %1200 = sbr.rel (%p1198) target = $region68
        $region67: #{tpu_custom_call.1} parent=59 // pred_region
          %s1201 = sand.u32 %s33, 1
          %s1202 = scalar_lea.sflag [#allocation5], %s1201
          %s1203 = sand.u32 %s160, 1
          %s1204 = smul.addr %s1203, 8
          %s1205 = scalar_lea.vmem [#allocation4], %s1204
          %1206 = dma.done %s1202, 128
        $region68: #{tpu_custom_call.1} parent=59 // pred_fallthru
          _
        // Predicated region
        $region69: #{tpu_custom_call.1} parent=59 // pred_check
          %p1207 = pneg %p203
        $region70: #{tpu_custom_call.1} parent=59 // pred_check_branch
          %1209 = sbr.rel (%p1207) target = $region72
        $region71: #{tpu_custom_call.1} parent=59 // pred_region
          %s1210 = sand.u32 %s33, 1
          %s1211 = scalar_lea.sflag [#allocation5], %s1210
          %s1212 = sand.u32 %s188, 1
          %s1213 = smul.addr %s1212, 8
          %s1214 = scalar_lea.vmem [#allocation6], %s1213
          %1215 = dma.done %s1211, 128
        $region72: #{tpu_custom_call.1} parent=59 // pred_fallthru
          _
        // Predicated region
        $region73: #{tpu_custom_call.1} parent=59 // pred_check
          %p1216 = pneg %p231
        $region74: #{tpu_custom_call.1} parent=59 // pred_check_branch
          %1218 = sbr.rel (%p1216) target = $region76
        $region75: #{tpu_custom_call.1} parent=59 // pred_region
          %s1219 = sand.u32 %s33, 1
          %s1220 = scalar_lea.sflag [#allocation8], %s1219
          %s1221 = sand.u32 %s216, 1
          %s1222 = scalar_lea.vmem [#allocation7], %s1221
          %1223 = dma.done %s1220, 16
        $region76: #{tpu_custom_call.1} parent=59 // pred_fallthru
          _
        // Predicated region
        $region77: #{tpu_custom_call.1} parent=59 // pred_check
          %p1224 = pneg %p259
        $region78: #{tpu_custom_call.1} parent=59 // pred_check_branch
          %1226 = sbr.rel (%p1224) target = $region80
        $region79: #{tpu_custom_call.1} parent=59 // pred_region
          %s1227 = sand.u32 %s33, 1
          %s1228 = scalar_lea.sflag [#allocation8], %s1227
          %s1229 = sand.u32 %s244, 1
          %s1230 = scalar_lea.vmem [#allocation9], %s1229
          %1231 = dma.done %s1228, 16
        $region80: #{tpu_custom_call.1} parent=59 // pred_fallthru
          _
        // Predicated region
        $region81: #{tpu_custom_call.1} parent=59 // pred_check
          %p1232 = pneg %p287
        $region82: #{tpu_custom_call.1} parent=59 // pred_check_branch
          %1234 = sbr.rel (%p1232) target = $region84
        $region83: #{tpu_custom_call.1} parent=59 // pred_region
          %s1235 = sand.u32 %s272, 1
          %s1236 = scalar_lea.sflag [#allocation11], %s1235
          %s1237 = sand.u32 %s272, 1
          %s1238 = scalar_lea.vmem [#allocation10], %s1237
          %1239 = dma.done %s1236, 16
        $region84: #{tpu_custom_call.1} parent=59 // pred_fallthru
          _
      $region60: #{tpu_custom_call.1} parent=5 // pred_fallthru
        _
    $region6: #{tpu_custom_call.1} parent=1 // loop_footer
      %s31 = sadd.s32 1, %s27
    $region7: #{tpu_custom_call.1} parent=1 // loop_footer_branch
      %26 = sbr.rel target = $region3
    $region8: #{tpu_custom_call.1} parent=1 // loop_exit
      _
    %1240 = vsyncpa [#allocation3], 1
    %s1241 = scalar_lea.sflag [#allocation3], 1
    %1242 = vsyncpa %s1241, 1
    %1243 = vsyncpa [#allocation5], 1
    %s1244 = scalar_lea.sflag [#allocation5], 1
    %1245 = vsyncpa %s1244, 1
    %1246 = vsyncpa [#allocation8], 1
    %s1247 = scalar_lea.sflag [#allocation8], 1
    %1248 = vsyncpa %s1247, 1
    %1249 = vsyncpa [#allocation11], 1
    %s1250 = scalar_lea.sflag [#allocation11], 1
    %1251 = vsyncpa %s1250, 1

</llo_original>
